<compile_context>
chip_gen: v7x
topology: tpu7x:2x2x1
jax: 0.10.0
libtpu: 0.0.40
codegen_flags: <defaults>
</compile_context>

<pallas_src>
import numpy as np

import jax
import jax.numpy as jnp
from jax import lax
from jax.experimental import pallas as pl
from jax.experimental.pallas import tpu as pltpu

LEAKY_SLOPE = 0.2
GAMMA = 0.99
MAX_ROW_TILE = 256   # multiple of 16 (bf16 sublane tile)
ROW_ALIGN = 16


def _leaky(v):
    return jnp.where(v >= 0.0, v, LEAKY_SLOPE * v)


# ----------------------------- fused kernel ---------------------------------


def _fused_forward_kernel(
    cc_ref, xact_ref, feats_ref,          # (4,T,288) bf16, (T,6) f32, (T,32) f32
    w1_ref, b1_ref,                       # conv1 block-diag (288,128) bf16, (1,128)
    w2_ref, b2_ref,                       # conv2            (128,30),  (1,30)
    wf1x_ref, wf1a_ref, bf1_ref,          # fc1 split        (30,64), (6,64), (1,64)
    wf2_ref, bf2_ref,                     # fc2              (64,32),  (1,32)
    wf3_ref, bf3_ref,                     # fc3              (32,1),   (1,1)
    wh1_ref, bh1_ref,                     # h_fc1 block-diag (32,64),  (1,64)
    wh2_ref, bh2_ref,                     # h_fc2 block-diag (64,64),  (1,64)
    wcmb_ref, bcmb_ref,                   # folded h_fc3/gamma combine (64,1),(1,1)
    out_ref):                             # (T, 1)
    f32 = jnp.float32

    # conv1 (3x3, pad=1) + bias + leaky + 2x2 maxpool.
    # cc_ref[d] is the im2col slab for pool-window offset d with lane order
    # (pooled position q, patch tap k); W1_blk = kron(I_16, W1) so a single
    # bf16 matmul yields all 16 pooled positions x 8 channels (lane order
    # (q, c)).  The pool max commutes with the shared bias and leaky-relu.
    w1 = w1_ref[...]                                                   # bf16
    m = jnp.dot(cc_ref[0], w1, preferred_element_type=f32)             # (T,128)
    for d in range(1, 4):
        m = jnp.maximum(m, jnp.dot(cc_ref[d], w1, preferred_element_type=f32))
    pooled = _leaky(m + b1_ref[...])                                   # (T,128)

    # conv2 (4x4 valid -> 1x1): pooled lane order (h, w, cin) is exactly the
    # conv2 flatten order, so this is one dense matmul.
    y2 = _leaky(jnp.dot(pooled, w2_ref[...], preferred_element_type=f32)
                + b2_ref[...])                                         # (T,30)

    # fc1 over concat([conv_feats, x_act]) via split weights (no lane concat).
    h = _leaky(jnp.dot(y2, wf1x_ref[...], preferred_element_type=f32)
               + jnp.dot(xact_ref[...], wf1a_ref[...], preferred_element_type=f32)
               + bf1_ref[...])                                         # (T,64)
    h = _leaky(jnp.dot(h, wf2_ref[...], preferred_element_type=f32)
               + bf2_ref[...])                                         # (T,32)
    rs = jnp.dot(h, wf3_ref[...], preferred_element_type=f32) + bf3_ref[...]

    # Both value-head passes at once on the lane-concatenated (T, 32) slab
    # [state||des , next_state||des] via block-diagonal weights; the final
    # gamma*h_next - h_state (+ bias) is pre-folded into wcmb / bcmb.
    v = _leaky(jnp.dot(feats_ref[...], wh1_ref[...], preferred_element_type=f32)
               + bh1_ref[...])                                         # (T,64)
    v = _leaky(jnp.dot(v, wh2_ref[...], preferred_element_type=f32)
               + bh2_ref[...])                                         # (T,64)
    comb = jnp.dot(v, wcmb_ref[...], preferred_element_type=f32) + bcmb_ref[...]

    out_ref[...] = (rs + comb).astype(out_ref.dtype)


# -------------------------- wrapper-side plumbing ----------------------------


def _round_up(x, m):
    return ((x + m - 1) // m) * m


def _conv1_patch_slabs(x_nhwc):
    """Per-pool-offset im2col for conv1 (3x3, pad=1, stride=1) on an 8x8 input.

    Returns a bf16 (4, N, 288) slab with
      slab[di*2+dj, n, (io*4+jo)*18 + (kh*3+kw)*2 + cin]
        = x_pad[n, 2*io+di+kh, 2*jo+dj+kw, cin]
    so conv1 is one (N,288)@(288,128) block-diagonal matmul per pool offset and
    the 2x2 maxpool is a max over the leading axis inside the kernel.
    """
    N, H, W, C = x_nhwc.shape
    xp = jnp.pad(x_nhwc, ((0, 0), (1, 1), (1, 1), (0, 0)))
    taps = jnp.stack(
        [jnp.stack([xp[:, kh:kh + H, kw:kw + W, :] for kw in range(3)], axis=-2)
         for kh in range(3)],
        axis=-3)                                           # (N, H, W, 3, 3, C)
    t = taps.reshape(N, H // 2, 2, W // 2, 2, 3, 3, C)     # i->(io,di), j->(jo,dj)
    t = jnp.transpose(t, (2, 4, 0, 1, 3, 5, 6, 7))         # (di,dj,N,io,jo,kh,kw,C)
    slab = t.reshape(4, N, (H // 2) * (W // 2) * 9 * C)    # (4, N, 288)
    return slab.astype(jnp.bfloat16)


def process_state_features(state_tensor, des_tensor):
    # TODO(synk): stand-in for discriminator_net.process_state_features.
    return jnp.concatenate([state_tensor, des_tensor], axis=1)


def make_raw_params(key):
    """Deterministic synthetic weights matching the PyTorch module's shapes.

    Linear weights are stored (in, out); a real torch checkpoint's (out, in)
    weights would only need a transpose here.
    """
    ks = jax.random.split(key, 16)

    def init(k, shape, scale=0.1):
        return scale * jax.random.normal(k, shape, dtype=jnp.float32)

    conv1_w = init(ks[0], (8, 2, 3, 3))          # (cout, cin, kh, kw)
    # The fused kernel stores this weight in bf16; keep the canonical values
    # bf16-representable so the f32 reference comparison stays tight.
    conv1_w = conv1_w.astype(jnp.bfloat16).astype(jnp.float32)

    return {
        "conv1_w": conv1_w,
        "conv1_b": init(ks[1], (8,)),
        "conv2_w": init(ks[2], (30, 8, 4, 4)),
        "conv2_b": init(ks[3], (30,)),
        "fc1_w": init(ks[4], (36, 64)), "fc1_b": init(ks[5], (64,)),
        "fc2_w": init(ks[6], (64, 32)), "fc2_b": init(ks[7], (32,)),
        "fc3_w": init(ks[8], (32, 1)),  "fc3_b": init(ks[9], (1,)),
        "h_fc1_w": init(ks[10], (16, 32)), "h_fc1_b": init(ks[11], (32,)),
        "h_fc2_w": init(ks[12], (32, 32)), "h_fc2_b": init(ks[13], (32,)),
        "h_fc3_w": init(ks[14], (32, 1)),  "h_fc3_b": init(ks[15], (1,)),
    }


def format_params(raw, gamma=GAMMA):
    """One-time reformat of weights into the fused kernel's layouts."""
    f32 = jnp.float32
    # conv1: (cout,cin,kh,kw) -> (kh,kw,cin,cout) -> (18,8);
    # block-diagonal over the 16 pooled positions -> (288,128), stored bf16.
    w1 = jnp.transpose(raw["conv1_w"], (2, 3, 1, 0)).reshape(18, 8)
    w1_blk = jnp.kron(jnp.eye(16, dtype=f32), w1).astype(jnp.bfloat16)
    b1_blk = jnp.tile(raw["conv1_b"], 16).reshape(1, 128).astype(f32)
    # conv2: (cout,cin,kh,kw) -> (h,w,cin,cout) -> (128,30), matching the
    # pooled lane order (h, w, cin) produced in the kernel.
    w2 = jnp.transpose(raw["conv2_w"], (2, 3, 1, 0)).reshape(128, 30)
    # Value head: run the state / next_state passes side by side in lanes with
    # block-diagonal weights and fold  rs + gamma*h_next - h_state  into the
    # final weight column, so gamma never enters the kernel as a traced value.
    eye2 = jnp.eye(2, dtype=f32)
    wh1_blk = jnp.kron(eye2, raw["h_fc1_w"])                  # (32, 64)
    bh1_blk = jnp.tile(raw["h_fc1_b"], 2).reshape(1, 64)
    wh2_blk = jnp.kron(eye2, raw["h_fc2_w"])                  # (64, 64)
    bh2_blk = jnp.tile(raw["h_fc2_b"], 2).reshape(1, 64)
    w_comb = jnp.concatenate([-raw["h_fc3_w"], gamma * raw["h_fc3_w"]], axis=0)
    b_comb = ((gamma - 1.0) * raw["h_fc3_b"]).reshape(1, 1)
    return {
        "conv1_w_blk": w1_blk, "conv1_b_blk": b1_blk,
        "conv2_w": w2, "conv2_b": raw["conv2_b"].reshape(1, 30),
        "fc1_w_x": raw["fc1_w"][:30, :],
        "fc1_w_a": raw["fc1_w"][30:, :],
        "fc1_b": raw["fc1_b"].reshape(1, 64),
        "fc2_w": raw["fc2_w"], "fc2_b": raw["fc2_b"].reshape(1, 32),
        "fc3_w": raw["fc3_w"], "fc3_b": raw["fc3_b"].reshape(1, 1),
        "h1_w_blk": wh1_blk, "h1_b_blk": bh1_blk,
        "h2_w_blk": wh2_blk, "h2_b_blk": bh2_blk,
        "w_comb": w_comb, "b_comb": b_comb,
    }


def wrapped_discriminator_forward(params, input_data_nchw, x_act,
                                  state_tensor, des_tensor, next_state_tensor):
    # NCHW (PyTorch) -> NHWC; remaining wrapper ops are tiny layout plumbing
    # that XLA fuses ahead of the single Pallas kernel launch.
    x = jnp.transpose(input_data_nchw, (0, 2, 3, 1)).astype(jnp.float32)
    n = x.shape[0]

    cc = _conv1_patch_slabs(x)                                  # (4, N, 288) bf16

    if x_act.ndim == 1:
        x_act = x_act[None, :]
    x_act = x_act.astype(jnp.float32)

    feats = jnp.concatenate(
        [process_state_features(state_tensor, des_tensor),
         process_state_features(next_state_tensor, des_tensor)],
        axis=1).astype(jnp.float32)                             # (N, 32)

    # 1-D row grid; weights stay VMEM-resident across grid steps.
    tile = min(MAX_ROW_TILE, _round_up(max(n, 1), ROW_ALIGN))
    n_pad = _round_up(n, tile)
    if n_pad != n:
        cc = jnp.pad(cc, ((0, 0), (0, n_pad - n), (0, 0)))
        x_act = jnp.pad(x_act, ((0, n_pad - n), (0, 0)))
        feats = jnp.pad(feats, ((0, n_pad - n), (0, 0)))
    grid = (n_pad // tile,)

    def _row_spec(a, row_axis):
        shape = list(a.shape)
        shape[row_axis] = tile

        def idx(i, _ax=row_axis, _nd=a.ndim):
            return tuple(i if d == _ax else 0 for d in range(_nd))

        return pl.BlockSpec(tuple(shape), idx)

    def _resident_spec(a):
        nd = a.ndim
        return pl.BlockSpec(a.shape, lambda i, _nd=nd: (0,) * _nd)

    weights = (
        params["conv1_w_blk"], params["conv1_b_blk"],
        params["conv2_w"], params["conv2_b"],
        params["fc1_w_x"], params["fc1_w_a"], params["fc1_b"],
        params["fc2_w"], params["fc2_b"],
        params["fc3_w"], params["fc3_b"],
        params["h1_w_blk"], params["h1_b_blk"],
        params["h2_w_blk"], params["h2_b_blk"],
        params["w_comb"], params["b_comb"],
    )
    acts = (cc, x_act, feats)
    in_specs = ([_row_spec(cc, 1), _row_spec(x_act, 0), _row_spec(feats, 0)]
                + [_resident_spec(w) for w in weights])

    out = pl.pallas_call(
        _fused_forward_kernel,
        grid=grid,
        in_specs=in_specs,
        out_specs=pl.BlockSpec((tile, 1), lambda i: (i, 0)),
        out_shape=jax.ShapeDtypeStruct((n_pad, 1), jnp.float32),
        compiler_params=pltpu.CompilerParams(
            dimension_semantics=("parallel",),
            vmem_limit_bytes=32 * 1024 * 1024),
    )(*acts, *weights)
    return out[:n, 0]


# ------------------------- pure-JAX reference (check) ------------------------


def reference_forward(raw, input_data, x_act, state, des, next_state):
    def lrelu(v):
        return jnp.where(v >= 0.0, v, LEAKY_SLOPE * v)

    y = lax.conv_general_dilated(input_data, raw["conv1_w"], (1, 1),
                                 ((1, 1), (1, 1)),
                                 dimension_numbers=("NCHW", "OIHW", "NCHW"))
    y = lrelu(y + raw["conv1_b"][None, :, None, None])
    y = lax.reduce_window(y, -jnp.inf, lax.max, (1, 1, 2, 2), (1, 1, 2, 2),
                          "VALID")
    y = lax.conv_general_dilated(y, raw["conv2_w"], (1, 1), "VALID",
                                 dimension_numbers=("NCHW", "OIHW", "NCHW"))
    y = lrelu(y + raw["conv2_b"][None, :, None, None])
    y = y.reshape(-1, 30)
    xa = x_act if x_act.ndim == 2 else x_act[None, :]
    xc = jnp.concatenate([y, xa], axis=1)
    h = lrelu(xc @ raw["fc1_w"] + raw["fc1_b"])
    h = lrelu(h @ raw["fc2_w"] + raw["fc2_b"])
    rs = h @ raw["fc3_w"] + raw["fc3_b"]

    def vhead(feat):
        v = lrelu(feat @ raw["h_fc1_w"] + raw["h_fc1_b"])
        v = lrelu(v @ raw["h_fc2_w"] + raw["h_fc2_b"])
        return v @ raw["h_fc3_w"] + raw["h_fc3_b"]

    hs = vhead(process_state_features(state, des))
    hn = vhead(process_state_features(next_state, des))
    return jnp.squeeze(rs + GAMMA * hn - hs, axis=-1)


# ------------------------------------ main -----------------------------------

if __name__ == "__main__":
    key = jax.random.PRNGKey(0)
    k_par, k_in, k_act, k_s, k_d, k_ns = jax.random.split(key, 6)

    raw = make_raw_params(k_par)
    params = format_params(raw)       # one-time reformat, outside the hot path

    batch = 2
    # Image rounded to bf16-representable values so the kernel's bf16 im2col
    # slab is exact and the f32 reference comparison stays tight.
    input_data = jax.random.normal(k_in, (batch, 2, 8, 8), dtype=jnp.float32)
    input_data = input_data.astype(jnp.bfloat16).astype(jnp.float32)   # NCHW
    x_act = jax.random.normal(k_act, (batch, 6), dtype=jnp.float32)
    state_tensor = jax.random.normal(k_s, (batch, 10), dtype=jnp.float32)
    des_tensor = jax.random.normal(k_d, (batch, 6), dtype=jnp.float32)
    next_state_tensor = jax.random.normal(k_ns, (batch, 10), dtype=jnp.float32)

    fwd = jax.jit(wrapped_discriminator_forward)
    f = fwd(params, input_data, x_act, state_tensor, des_tensor, next_state_tensor)
    jax.block_until_ready(f)
    assert f.shape == (batch,), f.shape

    ref = reference_forward(raw, input_data, x_act, state_tensor, des_tensor,
                            next_state_tensor)
    np.testing.assert_allclose(np.asarray(f), np.asarray(ref),
                               rtol=2e-3, atol=2e-4)
    print("KERNEL_OK")
</pallas_src>

<mosaic_0001>
module attributes {stable_mosaic.version = 11 : i64} {
  func.func @_fused_forward_kernel(%arg0: i32, %arg1: memref<4x16x288xbf16, #tpu.memory_space<vmem>>, %arg2: memref<16x6xf32, #tpu.memory_space<vmem>>, %arg3: memref<16x32xf32, #tpu.memory_space<vmem>>, %arg4: memref<288x128xbf16, #tpu.memory_space<vmem>>, %arg5: memref<1x128xf32, #tpu.memory_space<vmem>>, %arg6: memref<128x30xf32, #tpu.memory_space<vmem>>, %arg7: memref<1x30xf32, #tpu.memory_space<vmem>>, %arg8: memref<30x64xf32, #tpu.memory_space<vmem>>, %arg9: memref<6x64xf32, #tpu.memory_space<vmem>>, %arg10: memref<1x64xf32, #tpu.memory_space<vmem>>, %arg11: memref<64x32xf32, #tpu.memory_space<vmem>>, %arg12: memref<1x32xf32, #tpu.memory_space<vmem>>, %arg13: memref<32x1xf32, #tpu.memory_space<vmem>>, %arg14: memref<1x1xf32, #tpu.memory_space<vmem>>, %arg15: memref<32x64xf32, #tpu.memory_space<vmem>>, %arg16: memref<1x64xf32, #tpu.memory_space<vmem>>, %arg17: memref<64x64xf32, #tpu.memory_space<vmem>>, %arg18: memref<1x64xf32, #tpu.memory_space<vmem>>, %arg19: memref<64x1xf32, #tpu.memory_space<vmem>>, %arg20: memref<1x1xf32, #tpu.memory_space<vmem>>, %arg21: memref<16x1xf32, #tpu.memory_space<vmem>>) attributes {dimension_semantics = [#tpu.dimension_semantics<parallel>], iteration_bounds = array<i64: 1>, scalar_prefetch = 0 : i64, scratch_operands = 0 : i64, tpu.core_type = #tpu.core_type<tc>, window_params = [{transform_indices = @transform_0, window_bounds = array<i64: 4, 16, 288>}, {transform_indices = @transform_1, window_bounds = array<i64: 16, 6>}, {transform_indices = @transform_2, window_bounds = array<i64: 16, 32>}, {pipeline_mode = #tpu.pipeline_mode<synchronous>, transform_indices = @transform_3, window_bounds = array<i64: 288, 128>}, {pipeline_mode = #tpu.pipeline_mode<synchronous>, transform_indices = @transform_4, window_bounds = array<i64: 1, 128>}, {pipeline_mode = #tpu.pipeline_mode<synchronous>, transform_indices = @transform_5, window_bounds = array<i64: 128, 30>}, {pipeline_mode = #tpu.pipeline_mode<synchronous>, transform_indices = @transform_6, window_bounds = array<i64: 1, 30>}, {pipeline_mode = #tpu.pipeline_mode<synchronous>, transform_indices = @transform_7, window_bounds = array<i64: 30, 64>}, {pipeline_mode = #tpu.pipeline_mode<synchronous>, transform_indices = @transform_8, window_bounds = array<i64: 6, 64>}, {pipeline_mode = #tpu.pipeline_mode<synchronous>, transform_indices = @transform_9, window_bounds = array<i64: 1, 64>}, {pipeline_mode = #tpu.pipeline_mode<synchronous>, transform_indices = @transform_10, window_bounds = array<i64: 64, 32>}, {pipeline_mode = #tpu.pipeline_mode<synchronous>, transform_indices = @transform_11, window_bounds = array<i64: 1, 32>}, {pipeline_mode = #tpu.pipeline_mode<synchronous>, transform_indices = @transform_12, window_bounds = array<i64: 32, 1>}, {pipeline_mode = #tpu.pipeline_mode<synchronous>, transform_indices = @transform_13, window_bounds = array<i64: 1, 1>}, {pipeline_mode = #tpu.pipeline_mode<synchronous>, transform_indices = @transform_14, window_bounds = array<i64: 32, 64>}, {pipeline_mode = #tpu.pipeline_mode<synchronous>, transform_indices = @transform_15, window_bounds = array<i64: 1, 64>}, {pipeline_mode = #tpu.pipeline_mode<synchronous>, transform_indices = @transform_16, window_bounds = array<i64: 64, 64>}, {pipeline_mode = #tpu.pipeline_mode<synchronous>, transform_indices = @transform_17, window_bounds = array<i64: 1, 64>}, {pipeline_mode = #tpu.pipeline_mode<synchronous>, transform_indices = @transform_18, window_bounds = array<i64: 64, 1>}, {pipeline_mode = #tpu.pipeline_mode<synchronous>, transform_indices = @transform_19, window_bounds = array<i64: 1, 1>}, {transform_indices = @transform_20, window_bounds = array<i64: 16, 1>}]} {
    %c0 = arith.constant 0 : index
    %c0_0 = arith.constant 0 : index
    %0 = vector.load %arg4[%c0, %c0_0] : memref<288x128xbf16, #tpu.memory_space<vmem>>, vector<288x128xbf16>
    %c0_1 = arith.constant 0 : index
    %c0_2 = arith.constant 0 : index
    %c0_3 = arith.constant 0 : index
    %1 = vector.load %arg1[%c0_1, %c0_2, %c0_3] : memref<4x16x288xbf16, #tpu.memory_space<vmem>>, vector<1x16x288xbf16>
    %2 = vector.shape_cast %1 : vector<1x16x288xbf16> to vector<16x288xbf16>
    %cst = arith.constant dense<0.000000e+00> : vector<16x128xf32>
    %3 = tpu.matmul %2, %0, %cst {dimension_numbers = #tpu.dot_dimension_numbers<[1], [0], [0], [1], [0, 0, 1, 1], [], []>} : vector<16x288xbf16>, vector<288x128xbf16>, vector<16x128xf32> -> vector<16x128xf32>
    %c1 = arith.constant 1 : index
    %c0_4 = arith.constant 0 : index
    %c0_5 = arith.constant 0 : index
    %4 = vector.load %arg1[%c1, %c0_4, %c0_5] : memref<4x16x288xbf16, #tpu.memory_space<vmem>>, vector<1x16x288xbf16>
    %5 = vector.shape_cast %4 : vector<1x16x288xbf16> to vector<16x288xbf16>
    %cst_6 = arith.constant dense<0.000000e+00> : vector<16x128xf32>
    %6 = tpu.matmul %5, %0, %cst_6 {dimension_numbers = #tpu.dot_dimension_numbers<[1], [0], [0], [1], [0, 0, 1, 1], [], []>} : vector<16x288xbf16>, vector<288x128xbf16>, vector<16x128xf32> -> vector<16x128xf32>
    %7 = arith.maximumf %3, %6 : vector<16x128xf32>
    %c2 = arith.constant 2 : index
    %c0_7 = arith.constant 0 : index
    %c0_8 = arith.constant 0 : index
    %8 = vector.load %arg1[%c2, %c0_7, %c0_8] : memref<4x16x288xbf16, #tpu.memory_space<vmem>>, vector<1x16x288xbf16>
    %9 = vector.shape_cast %8 : vector<1x16x288xbf16> to vector<16x288xbf16>
    %cst_9 = arith.constant dense<0.000000e+00> : vector<16x128xf32>
    %10 = tpu.matmul %9, %0, %cst_9 {dimension_numbers = #tpu.dot_dimension_numbers<[1], [0], [0], [1], [0, 0, 1, 1], [], []>} : vector<16x288xbf16>, vector<288x128xbf16>, vector<16x128xf32> -> vector<16x128xf32>
    %11 = arith.maximumf %7, %10 : vector<16x128xf32>
    %c3 = arith.constant 3 : index
    %c0_10 = arith.constant 0 : index
    %c0_11 = arith.constant 0 : index
    %12 = vector.load %arg1[%c3, %c0_10, %c0_11] : memref<4x16x288xbf16, #tpu.memory_space<vmem>>, vector<1x16x288xbf16>
    %13 = vector.shape_cast %12 : vector<1x16x288xbf16> to vector<16x288xbf16>
    %cst_12 = arith.constant dense<0.000000e+00> : vector<16x128xf32>
    %14 = tpu.matmul %13, %0, %cst_12 {dimension_numbers = #tpu.dot_dimension_numbers<[1], [0], [0], [1], [0, 0, 1, 1], [], []>} : vector<16x288xbf16>, vector<288x128xbf16>, vector<16x128xf32> -> vector<16x128xf32>
    %15 = arith.maximumf %11, %14 : vector<16x128xf32>
    %c0_13 = arith.constant 0 : index
    %c0_14 = arith.constant 0 : index
    %16 = vector.load %arg5[%c0_13, %c0_14] : memref<1x128xf32, #tpu.memory_space<vmem>>, vector<1x128xf32>
    %17 = vector.broadcast %16 : vector<1x128xf32> to vector<16x128xf32>
    %18 = arith.addf %15, %17 : vector<16x128xf32>
    %cst_15 = arith.constant 0.000000e+00 : f32
    %19 = vector.broadcast %cst_15 : f32 to vector<16x128xf32>
    %20 = arith.cmpf oge, %18, %19 : vector<16x128xf32>
    %cst_16 = arith.constant 2.000000e-01 : f32
    %21 = vector.broadcast %cst_16 : f32 to vector<16x128xf32>
    %22 = arith.mulf %21, %18 : vector<16x128xf32>
    %23 = arith.select %20, %18, %22 : vector<16x128xi1>, vector<16x128xf32>
    %c0_17 = arith.constant 0 : index
    %c0_18 = arith.constant 0 : index
    %24 = vector.load %arg6[%c0_17, %c0_18] : memref<128x30xf32, #tpu.memory_space<vmem>>, vector<128x30xf32>
    %cst_19 = arith.constant dense<0.000000e+00> : vector<16x30xf32>
    %25 = tpu.matmul %23, %24, %cst_19 {dimension_numbers = #tpu.dot_dimension_numbers<[1], [0], [0], [1], [0, 0, 1, 1], [], []>} : vector<16x128xf32>, vector<128x30xf32>, vector<16x30xf32> -> vector<16x30xf32>
    %c0_20 = arith.constant 0 : index
    %c0_21 = arith.constant 0 : index
    %26 = vector.load %arg7[%c0_20, %c0_21] : memref<1x30xf32, #tpu.memory_space<vmem>>, vector<1x30xf32>
    %27 = vector.broadcast %26 : vector<1x30xf32> to vector<16x30xf32>
    %28 = arith.addf %25, %27 : vector<16x30xf32>
    %cst_22 = arith.constant 0.000000e+00 : f32
    %29 = vector.broadcast %cst_22 : f32 to vector<16x30xf32>
    %30 = arith.cmpf oge, %28, %29 : vector<16x30xf32>
    %cst_23 = arith.constant 2.000000e-01 : f32
    %31 = vector.broadcast %cst_23 : f32 to vector<16x30xf32>
    %32 = arith.mulf %31, %28 : vector<16x30xf32>
    %33 = arith.select %30, %28, %32 : vector<16x30xi1>, vector<16x30xf32>
    %c0_24 = arith.constant 0 : index
    %c0_25 = arith.constant 0 : index
    %34 = vector.load %arg8[%c0_24, %c0_25] : memref<30x64xf32, #tpu.memory_space<vmem>>, vector<30x64xf32>
    %cst_26 = arith.constant dense<0.000000e+00> : vector<16x64xf32>
    %35 = tpu.matmul %33, %34, %cst_26 {dimension_numbers = #tpu.dot_dimension_numbers<[1], [0], [0], [1], [0, 0, 1, 1], [], []>} : vector<16x30xf32>, vector<30x64xf32>, vector<16x64xf32> -> vector<16x64xf32>
    %c0_27 = arith.constant 0 : index
    %c0_28 = arith.constant 0 : index
    %36 = vector.load %arg2[%c0_27, %c0_28] : memref<16x6xf32, #tpu.memory_space<vmem>>, vector<16x6xf32>
    %c0_29 = arith.constant 0 : index
    %c0_30 = arith.constant 0 : index
    %37 = vector.load %arg9[%c0_29, %c0_30] : memref<6x64xf32, #tpu.memory_space<vmem>>, vector<6x64xf32>
    %cst_31 = arith.constant dense<0.000000e+00> : vector<16x64xf32>
    %38 = tpu.matmul %36, %37, %cst_31 {dimension_numbers = #tpu.dot_dimension_numbers<[1], [0], [0], [1], [0, 0, 1, 1], [], []>} : vector<16x6xf32>, vector<6x64xf32>, vector<16x64xf32> -> vector<16x64xf32>
    %39 = arith.addf %35, %38 : vector<16x64xf32>
    %c0_32 = arith.constant 0 : index
    %c0_33 = arith.constant 0 : index
    %40 = vector.load %arg10[%c0_32, %c0_33] : memref<1x64xf32, #tpu.memory_space<vmem>>, vector<1x64xf32>
    %41 = vector.broadcast %40 : vector<1x64xf32> to vector<16x64xf32>
    %42 = arith.addf %39, %41 : vector<16x64xf32>
    %cst_34 = arith.constant 0.000000e+00 : f32
    %43 = vector.broadcast %cst_34 : f32 to vector<16x64xf32>
    %44 = arith.cmpf oge, %42, %43 : vector<16x64xf32>
    %cst_35 = arith.constant 2.000000e-01 : f32
    %45 = vector.broadcast %cst_35 : f32 to vector<16x64xf32>
    %46 = arith.mulf %45, %42 : vector<16x64xf32>
    %47 = arith.select %44, %42, %46 : vector<16x64xi1>, vector<16x64xf32>
    %c0_36 = arith.constant 0 : index
    %c0_37 = arith.constant 0 : index
    %48 = vector.load %arg11[%c0_36, %c0_37] : memref<64x32xf32, #tpu.memory_space<vmem>>, vector<64x32xf32>
    %cst_38 = arith.constant dense<0.000000e+00> : vector<16x32xf32>
    %49 = tpu.matmul %47, %48, %cst_38 {dimension_numbers = #tpu.dot_dimension_numbers<[1], [0], [0], [1], [0, 0, 1, 1], [], []>} : vector<16x64xf32>, vector<64x32xf32>, vector<16x32xf32> -> vector<16x32xf32>
    %c0_39 = arith.constant 0 : index
    %c0_40 = arith.constant 0 : index
    %50 = vector.load %arg12[%c0_39, %c0_40] : memref<1x32xf32, #tpu.memory_space<vmem>>, vector<1x32xf32>
    %51 = vector.broadcast %50 : vector<1x32xf32> to vector<16x32xf32>
    %52 = arith.addf %49, %51 : vector<16x32xf32>
    %cst_41 = arith.constant 0.000000e+00 : f32
    %53 = vector.broadcast %cst_41 : f32 to vector<16x32xf32>
    %54 = arith.cmpf oge, %52, %53 : vector<16x32xf32>
    %cst_42 = arith.constant 2.000000e-01 : f32
    %55 = vector.broadcast %cst_42 : f32 to vector<16x32xf32>
    %56 = arith.mulf %55, %52 : vector<16x32xf32>
    %57 = arith.select %54, %52, %56 : vector<16x32xi1>, vector<16x32xf32>
    %c0_43 = arith.constant 0 : index
    %c0_44 = arith.constant 0 : index
    %58 = vector.load %arg13[%c0_43, %c0_44] : memref<32x1xf32, #tpu.memory_space<vmem>>, vector<32x1xf32>
    %cst_45 = arith.constant dense<0.000000e+00> : vector<16x1xf32>
    %59 = tpu.matmul %57, %58, %cst_45 {dimension_numbers = #tpu.dot_dimension_numbers<[1], [0], [0], [1], [0, 0, 1, 1], [], []>} : vector<16x32xf32>, vector<32x1xf32>, vector<16x1xf32> -> vector<16x1xf32>
    %c0_46 = arith.constant 0 : index
    %c0_47 = arith.constant 0 : index
    %60 = vector.load %arg14[%c0_46, %c0_47] : memref<1x1xf32, #tpu.memory_space<vmem>>, vector<1x1xf32>
    %61 = vector.broadcast %60 : vector<1x1xf32> to vector<16x1xf32>
    %62 = arith.addf %59, %61 : vector<16x1xf32>
    %c0_48 = arith.constant 0 : index
    %c0_49 = arith.constant 0 : index
    %63 = vector.load %arg3[%c0_48, %c0_49] : memref<16x32xf32, #tpu.memory_space<vmem>>, vector<16x32xf32>
    %c0_50 = arith.constant 0 : index
    %c0_51 = arith.constant 0 : index
    %64 = vector.load %arg15[%c0_50, %c0_51] : memref<32x64xf32, #tpu.memory_space<vmem>>, vector<32x64xf32>
    %cst_52 = arith.constant dense<0.000000e+00> : vector<16x64xf32>
    %65 = tpu.matmul %63, %64, %cst_52 {dimension_numbers = #tpu.dot_dimension_numbers<[1], [0], [0], [1], [0, 0, 1, 1], [], []>} : vector<16x32xf32>, vector<32x64xf32>, vector<16x64xf32> -> vector<16x64xf32>
    %c0_53 = arith.constant 0 : index
    %c0_54 = arith.constant 0 : index
    %66 = vector.load %arg16[%c0_53, %c0_54] : memref<1x64xf32, #tpu.memory_space<vmem>>, vector<1x64xf32>
    %67 = vector.broadcast %66 : vector<1x64xf32> to vector<16x64xf32>
    %68 = arith.addf %65, %67 : vector<16x64xf32>
    %cst_55 = arith.constant 0.000000e+00 : f32
    %69 = vector.broadcast %cst_55 : f32 to vector<16x64xf32>
    %70 = arith.cmpf oge, %68, %69 : vector<16x64xf32>
    %cst_56 = arith.constant 2.000000e-01 : f32
    %71 = vector.broadcast %cst_56 : f32 to vector<16x64xf32>
    %72 = arith.mulf %71, %68 : vector<16x64xf32>
    %73 = arith.select %70, %68, %72 : vector<16x64xi1>, vector<16x64xf32>
    %c0_57 = arith.constant 0 : index
    %c0_58 = arith.constant 0 : index
    %74 = vector.load %arg17[%c0_57, %c0_58] : memref<64x64xf32, #tpu.memory_space<vmem>>, vector<64x64xf32>
    %cst_59 = arith.constant dense<0.000000e+00> : vector<16x64xf32>
    %75 = tpu.matmul %73, %74, %cst_59 {dimension_numbers = #tpu.dot_dimension_numbers<[1], [0], [0], [1], [0, 0, 1, 1], [], []>} : vector<16x64xf32>, vector<64x64xf32>, vector<16x64xf32> -> vector<16x64xf32>
    %c0_60 = arith.constant 0 : index
    %c0_61 = arith.constant 0 : index
    %76 = vector.load %arg18[%c0_60, %c0_61] : memref<1x64xf32, #tpu.memory_space<vmem>>, vector<1x64xf32>
    %77 = vector.broadcast %76 : vector<1x64xf32> to vector<16x64xf32>
    %78 = arith.addf %75, %77 : vector<16x64xf32>
    %cst_62 = arith.constant 0.000000e+00 : f32
    %79 = vector.broadcast %cst_62 : f32 to vector<16x64xf32>
    %80 = arith.cmpf oge, %78, %79 : vector<16x64xf32>
    %cst_63 = arith.constant 2.000000e-01 : f32
    %81 = vector.broadcast %cst_63 : f32 to vector<16x64xf32>
    %82 = arith.mulf %81, %78 : vector<16x64xf32>
    %83 = arith.select %80, %78, %82 : vector<16x64xi1>, vector<16x64xf32>
    %c0_64 = arith.constant 0 : index
    %c0_65 = arith.constant 0 : index
    %84 = vector.load %arg19[%c0_64, %c0_65] : memref<64x1xf32, #tpu.memory_space<vmem>>, vector<64x1xf32>
    %cst_66 = arith.constant dense<0.000000e+00> : vector<16x1xf32>
    %85 = tpu.matmul %83, %84, %cst_66 {dimension_numbers = #tpu.dot_dimension_numbers<[1], [0], [0], [1], [0, 0, 1, 1], [], []>} : vector<16x64xf32>, vector<64x1xf32>, vector<16x1xf32> -> vector<16x1xf32>
    %c0_67 = arith.constant 0 : index
    %c0_68 = arith.constant 0 : index
    %86 = vector.load %arg20[%c0_67, %c0_68] : memref<1x1xf32, #tpu.memory_space<vmem>>, vector<1x1xf32>
    %87 = vector.broadcast %86 : vector<1x1xf32> to vector<16x1xf32>
    %88 = arith.addf %85, %87 : vector<16x1xf32>
    %89 = arith.addf %62, %88 : vector<16x1xf32>
    %c0_69 = arith.constant 0 : index
    %c0_70 = arith.constant 0 : index
    %90 = vector.load %arg21[%c0_69, %c0_70] : memref<16x1xf32, #tpu.memory_space<vmem>>, vector<16x1xf32>
    tpu.vector_store %arg21[%c0_69, %c0_70], %89 {strides = array<i32>} : memref<16x1xf32, #tpu.memory_space<vmem>>, vector<16x1xf32>,
    return
  }
  func.func @transform_0(%arg0: i32) -> (i32, i32, i32) {
    %c0_i32 = arith.constant 0 : i32
    %c0_i32_0 = arith.constant 0 : i32
    %c0_i32_1 = arith.constant 0 : i32
    return %c0_i32, %arg0, %c0_i32_0 : i32, i32, i32
  }
  func.func @transform_1(%arg0: i32) -> (i32, i32) {
    %c0_i32 = arith.constant 0 : i32
    %c0_i32_0 = arith.constant 0 : i32
    return %arg0, %c0_i32 : i32, i32
  }
  func.func @transform_2(%arg0: i32) -> (i32, i32) {
    %c0_i32 = arith.constant 0 : i32
    %c0_i32_0 = arith.constant 0 : i32
    return %arg0, %c0_i32 : i32, i32
  }
  func.func @transform_3(%arg0: i32) -> (i32, i32) {
    %c0_i32 = arith.constant 0 : i32
    %c0_i32_0 = arith.constant 0 : i32
    %c0_i32_1 = arith.constant 0 : i32
    return %c0_i32, %c0_i32_0 : i32, i32
  }
  func.func @transform_4(%arg0: i32) -> (i32, i32) {
    %c0_i32 = arith.constant 0 : i32
    %c0_i32_0 = arith.constant 0 : i32
    %c0_i32_1 = arith.constant 0 : i32
    return %c0_i32, %c0_i32_0 : i32, i32
  }
  func.func @transform_5(%arg0: i32) -> (i32, i32) {
    %c0_i32 = arith.constant 0 : i32
    %c0_i32_0 = arith.constant 0 : i32
    %c0_i32_1 = arith.constant 0 : i32
    return %c0_i32, %c0_i32_0 : i32, i32
  }
  func.func @transform_6(%arg0: i32) -> (i32, i32) {
    %c0_i32 = arith.constant 0 : i32
    %c0_i32_0 = arith.constant 0 : i32
    %c0_i32_1 = arith.constant 0 : i32
    return %c0_i32, %c0_i32_0 : i32, i32
  }
  func.func @transform_7(%arg0: i32) -> (i32, i32) {
    %c0_i32 = arith.constant 0 : i32
    %c0_i32_0 = arith.constant 0 : i32
    %c0_i32_1 = arith.constant 0 : i32
    return %c0_i32, %c0_i32_0 : i32, i32
  }
  func.func @transform_8(%arg0: i32) -> (i32, i32) {
    %c0_i32 = arith.constant 0 : i32
    %c0_i32_0 = arith.constant 0 : i32
    %c0_i32_1 = arith.constant 0 : i32
    return %c0_i32, %c0_i32_0 : i32, i32
  }
  func.func @transform_9(%arg0: i32) -> (i32, i32) {
    %c0_i32 = arith.constant 0 : i32
    %c0_i32_0 = arith.constant 0 : i32
    %c0_i32_1 = arith.constant 0 : i32
    return %c0_i32, %c0_i32_0 : i32, i32
  }
  func.func @transform_10(%arg0: i32) -> (i32, i32) {
    %c0_i32 = arith.constant 0 : i32
    %c0_i32_0 = arith.constant 0 : i32
    %c0_i32_1 = arith.constant 0 : i32
    return %c0_i32, %c0_i32_0 : i32, i32
  }
  func.func @transform_11(%arg0: i32) -> (i32, i32) {
    %c0_i32 = arith.constant 0 : i32
    %c0_i32_0 = arith.constant 0 : i32
    %c0_i32_1 = arith.constant 0 : i32
    return %c0_i32, %c0_i32_0 : i32, i32
  }
  func.func @transform_12(%arg0: i32) -> (i32, i32) {
    %c0_i32 = arith.constant 0 : i32
    %c0_i32_0 = arith.constant 0 : i32
    %c0_i32_1 = arith.constant 0 : i32
    return %c0_i32, %c0_i32_0 : i32, i32
  }
  func.func @transform_13(%arg0: i32) -> (i32, i32) {
    %c0_i32 = arith.constant 0 : i32
    %c0_i32_0 = arith.constant 0 : i32
    %c0_i32_1 = arith.constant 0 : i32
    return %c0_i32, %c0_i32_0 : i32, i32
  }
  func.func @transform_14(%arg0: i32) -> (i32, i32) {
    %c0_i32 = arith.constant 0 : i32
    %c0_i32_0 = arith.constant 0 : i32
    %c0_i32_1 = arith.constant 0 : i32
    return %c0_i32, %c0_i32_0 : i32, i32
  }
  func.func @transform_15(%arg0: i32) -> (i32, i32) {
    %c0_i32 = arith.constant 0 : i32
    %c0_i32_0 = arith.constant 0 : i32
    %c0_i32_1 = arith.constant 0 : i32
    return %c0_i32, %c0_i32_0 : i32, i32
  }
  func.func @transform_16(%arg0: i32) -> (i32, i32) {
    %c0_i32 = arith.constant 0 : i32
    %c0_i32_0 = arith.constant 0 : i32
    %c0_i32_1 = arith.constant 0 : i32
    return %c0_i32, %c0_i32_0 : i32, i32
  }
  func.func @transform_17(%arg0: i32) -> (i32, i32) {
    %c0_i32 = arith.constant 0 : i32
    %c0_i32_0 = arith.constant 0 : i32
    %c0_i32_1 = arith.constant 0 : i32
    return %c0_i32, %c0_i32_0 : i32, i32
  }
  func.func @transform_18(%arg0: i32) -> (i32, i32) {
    %c0_i32 = arith.constant 0 : i32
    %c0_i32_0 = arith.constant 0 : i32
    %c0_i32_1 = arith.constant 0 : i32
    return %c0_i32, %c0_i32_0 : i32, i32
  }
  func.func @transform_19(%arg0: i32) -> (i32, i32) {
    %c0_i32 = arith.constant 0 : i32
    %c0_i32_0 = arith.constant 0 : i32
    %c0_i32_1 = arith.constant 0 : i32
    return %c0_i32, %c0_i32_0 : i32, i32
  }
  func.func @transform_20(%arg0: i32) -> (i32, i32) {
    %c0_i32 = arith.constant 0 : i32
    %c0_i32_0 = arith.constant 0 : i32
    return %arg0, %c0_i32 : i32, i32
  }
}

</mosaic_0001>

<llo_original>
// kernel: wrapped_discriminator_forward.1
$region0: #{wrapped_discriminator_forward.1}
  #allocation0 [shape = 'u32[]', space=smem, size = 0x4, offset = 0x4, fixed_abs, tag = 'smem constant byte address 0x4 - core index']
  #allocation1 [shape = 'u32[144,128]{1,0:T(1,128)}', space=vmem, size = 0x12000, scoped, tag = 'internal scratch']
  #allocation2 [shape = 'f32[1,1]{1,0:T(1,128)S(1)}', space=vmem, size = 0x200, scoped, tag = 'scoped memory for wrapped_discriminator_forward.1']
  #allocation3 [shape = 'f32[1,1]{1,0:T(1,128)S(1)}', space=vmem, size = 0x200, scoped, tag = 'scoped memory for wrapped_discriminator_forward.1']
  %s0 = inlined_call_operand.vmem [shape: bf16[4,16,288], index: 0, kind: input, shape index: {}]
  %s1 = inlined_call_operand.vmem [shape: f32[16,6], index: 1, kind: input, shape index: {}]
  %s2 = inlined_call_operand.vmem [shape: f32[16,32], index: 2, kind: input, shape index: {}]
  %s3 = inlined_call_operand.vmem [shape: bf16[288,128], index: 3, kind: input, shape index: {}]
  %s4 = inlined_call_operand.vmem [shape: f32[1,128], index: 4, kind: input, shape index: {}]
  %s5 = inlined_call_operand.vmem [shape: f32[128,30], index: 5, kind: input, shape index: {}]
  %s6 = inlined_call_operand.vmem [shape: f32[1,30], index: 6, kind: input, shape index: {}]
  %s7 = inlined_call_operand.vmem [shape: f32[30,64], index: 7, kind: input, shape index: {}]
  %s8 = inlined_call_operand.vmem [shape: f32[6,64], index: 8, kind: input, shape index: {}]
  %s9 = inlined_call_operand.vmem [shape: f32[1,64], index: 9, kind: input, shape index: {}]
  %s10 = inlined_call_operand.vmem [shape: f32[64,32], index: 10, kind: input, shape index: {}]
  %s11 = inlined_call_operand.vmem [shape: f32[1,32], index: 11, kind: input, shape index: {}]
  %s12 = inlined_call_operand.vmem [shape: f32[32,1], index: 12, kind: input, shape index: {}]
  %s13 = inlined_call_operand.<no memory space> [shape: f32[1,1], index: 13, kind: input, shape index: {}]
  %s14 = inlined_call_operand.vmem [shape: f32[32,64], index: 14, kind: input, shape index: {}]
  %s15 = inlined_call_operand.vmem [shape: f32[1,64], index: 15, kind: input, shape index: {}]
  %s16 = inlined_call_operand.vmem [shape: f32[64,64], index: 16, kind: input, shape index: {}]
  %s17 = inlined_call_operand.vmem [shape: f32[1,64], index: 17, kind: input, shape index: {}]
  %s18 = inlined_call_operand.vmem [shape: f32[64,1], index: 18, kind: input, shape index: {}]
  %s19 = inlined_call_operand.<no memory space> [shape: f32[1,1], index: 19, kind: input, shape index: {}]
  %s20 = inlined_call_operand.vmem [shape: f32[16,1], index: 20, kind: output, shape index: {}]
  %s21 = sld [smem:[#allocation0]]
  $region90: #{wrapped_discriminator_forward.1} parent=0
    _
  %s23 = ssub.s32 1, %s21
  %s24 = scalar_select 0, %s23, %s21
  %v25 = vstv %s13
  %26 = vst [vmem:[#allocation2] sm:$0x1] %v25
  %v27 = vstv %s19
  %28 = vst [vmem:[#allocation3] sm:$0x1] %v27
  // Predicated region
  $region2: #{wrapped_discriminator_forward.1} parent=0 // pred_check
    _
  $region3: #{wrapped_discriminator_forward.1} parent=0 // pred_check_branch
    %30 = sbr.rel (0) target = $region5
  $region4: #{wrapped_discriminator_forward.1} parent=0 // pred_region
    _
  $region5: #{wrapped_discriminator_forward.1} parent=0 // pred_fallthru
    _
  // Predicated region
  $region6: #{wrapped_discriminator_forward.1} parent=0 // pred_check
    _
  $region7: #{wrapped_discriminator_forward.1} parent=0 // pred_check_branch
    %32 = sbr.rel (0) target = $region9
  $region8: #{wrapped_discriminator_forward.1} parent=0 // pred_region
    _
  $region9: #{wrapped_discriminator_forward.1} parent=0 // pred_fallthru
    _
  // Predicated region
  $region10: #{wrapped_discriminator_forward.1} parent=0 // pred_check
    _
  $region11: #{wrapped_discriminator_forward.1} parent=0 // pred_check_branch
    %34 = sbr.rel (0) target = $region13
  $region12: #{wrapped_discriminator_forward.1} parent=0 // pred_region
    _
  $region13: #{wrapped_discriminator_forward.1} parent=0 // pred_fallthru
    _
  // Predicated region
  $region14: #{wrapped_discriminator_forward.1} parent=0 // pred_check
    _
  $region15: #{wrapped_discriminator_forward.1} parent=0 // pred_check_branch
    %36 = sbr.rel (0) target = $region17
  $region16: #{wrapped_discriminator_forward.1} parent=0 // pred_region
    _
  $region17: #{wrapped_discriminator_forward.1} parent=0 // pred_fallthru
    _
  // Predicated region
  $region18: #{wrapped_discriminator_forward.1} parent=0 // pred_check
    _
  $region19: #{wrapped_discriminator_forward.1} parent=0 // pred_check_branch
    %38 = sbr.rel (0) target = $region21
  $region20: #{wrapped_discriminator_forward.1} parent=0 // pred_region
    _
  $region21: #{wrapped_discriminator_forward.1} parent=0 // pred_fallthru
    _
  // Predicated region
  $region22: #{wrapped_discriminator_forward.1} parent=0 // pred_check
    _
  $region23: #{wrapped_discriminator_forward.1} parent=0 // pred_check_branch
    %40 = sbr.rel (0) target = $region25
  $region24: #{wrapped_discriminator_forward.1} parent=0 // pred_region
    _
  $region25: #{wrapped_discriminator_forward.1} parent=0 // pred_fallthru
    _
  // Predicated region
  $region26: #{wrapped_discriminator_forward.1} parent=0 // pred_check
    _
  $region27: #{wrapped_discriminator_forward.1} parent=0 // pred_check_branch
    %42 = sbr.rel (0) target = $region29
  $region28: #{wrapped_discriminator_forward.1} parent=0 // pred_region
    _
  $region29: #{wrapped_discriminator_forward.1} parent=0 // pred_fallthru
    _
  // Predicated region
  $region30: #{wrapped_discriminator_forward.1} parent=0 // pred_check
    _
  $region31: #{wrapped_discriminator_forward.1} parent=0 // pred_check_branch
    %44 = sbr.rel (0) target = $region33
  $region32: #{wrapped_discriminator_forward.1} parent=0 // pred_region
    _
  $region33: #{wrapped_discriminator_forward.1} parent=0 // pred_fallthru
    _
  // Predicated region
  $region34: #{wrapped_discriminator_forward.1} parent=0 // pred_check
    _
  $region35: #{wrapped_discriminator_forward.1} parent=0 // pred_check_branch
    %46 = sbr.rel (0) target = $region37
  $region36: #{wrapped_discriminator_forward.1} parent=0 // pred_region
    _
  $region37: #{wrapped_discriminator_forward.1} parent=0 // pred_fallthru
    _
  // Predicated region
  $region38: #{wrapped_discriminator_forward.1} parent=0 // pred_check
    _
  $region39: #{wrapped_discriminator_forward.1} parent=0 // pred_check_branch
    %48 = sbr.rel (0) target = $region41
  $region40: #{wrapped_discriminator_forward.1} parent=0 // pred_region
    _
  $region41: #{wrapped_discriminator_forward.1} parent=0 // pred_fallthru
    _
  // Predicated region
  $region42: #{wrapped_discriminator_forward.1} parent=0 // pred_check
    _
  $region43: #{wrapped_discriminator_forward.1} parent=0 // pred_check_branch
    %50 = sbr.rel (0) target = $region45
  $region44: #{wrapped_discriminator_forward.1} parent=0 // pred_region
    _
  $region45: #{wrapped_discriminator_forward.1} parent=0 // pred_fallthru
    _
  // Predicated region
  $region46: #{wrapped_discriminator_forward.1} parent=0 // pred_check
    _
  $region47: #{wrapped_discriminator_forward.1} parent=0 // pred_check_branch
    %52 = sbr.rel (0) target = $region49
  $region48: #{wrapped_discriminator_forward.1} parent=0 // pred_region
    _
  $region49: #{wrapped_discriminator_forward.1} parent=0 // pred_fallthru
    _
  // Predicated region
  $region50: #{wrapped_discriminator_forward.1} parent=0 // pred_check
    _
  $region51: #{wrapped_discriminator_forward.1} parent=0 // pred_check_branch
    %54 = sbr.rel (0) target = $region53
  $region52: #{wrapped_discriminator_forward.1} parent=0 // pred_region
    _
  $region53: #{wrapped_discriminator_forward.1} parent=0 // pred_fallthru
    _
  // Predicated region
  $region54: #{wrapped_discriminator_forward.1} parent=0 // pred_check
    _
  $region55: #{wrapped_discriminator_forward.1} parent=0 // pred_check_branch
    %56 = sbr.rel (0) target = $region57
  $region56: #{wrapped_discriminator_forward.1} parent=0 // pred_region
    _
  $region57: #{wrapped_discriminator_forward.1} parent=0 // pred_fallthru
    _
  // Predicated region
  $region58: #{wrapped_discriminator_forward.1} parent=0 // pred_check
    _
  $region59: #{wrapped_discriminator_forward.1} parent=0 // pred_check_branch
    %58 = sbr.rel (0) target = $region61
  $region60: #{wrapped_discriminator_forward.1} parent=0 // pred_region
    _
  $region61: #{wrapped_discriminator_forward.1} parent=0 // pred_fallthru
    _
  // Predicated region
  $region62: #{wrapped_discriminator_forward.1} parent=0 // pred_check
    _
  $region63: #{wrapped_discriminator_forward.1} parent=0 // pred_check_branch
    %60 = sbr.rel (0) target = $region65
  $region64: #{wrapped_discriminator_forward.1} parent=0 // pred_region
    _
  $region65: #{wrapped_discriminator_forward.1} parent=0 // pred_fallthru
    _
  // Predicated region
  $region66: #{wrapped_discriminator_forward.1} parent=0 // pred_check
    _
  $region67: #{wrapped_discriminator_forward.1} parent=0 // pred_check_branch
    %62 = sbr.rel (0) target = $region69
  $region68: #{wrapped_discriminator_forward.1} parent=0 // pred_region
    _
  $region69: #{wrapped_discriminator_forward.1} parent=0 // pred_fallthru
    _
  // Predicated region
  $region70: #{wrapped_discriminator_forward.1} parent=0 // pred_check
    _
  $region71: #{wrapped_discriminator_forward.1} parent=0 // pred_check_branch
    %64 = sbr.rel (0) target = $region73
  $region72: #{wrapped_discriminator_forward.1} parent=0 // pred_region
    _
  $region73: #{wrapped_discriminator_forward.1} parent=0 // pred_fallthru
    _
  // Predicated region
  $region74: #{wrapped_discriminator_forward.1} parent=0 // pred_check
    _
  $region75: #{wrapped_discriminator_forward.1} parent=0 // pred_check_branch
    %66 = sbr.rel (0) target = $region77
  $region76: #{wrapped_discriminator_forward.1} parent=0 // pred_region
    _
  $region77: #{wrapped_discriminator_forward.1} parent=0 // pred_fallthru
    _
  // Predicated region
  $region78: #{wrapped_discriminator_forward.1} parent=0 // pred_check
    _
  $region79: #{wrapped_discriminator_forward.1} parent=0 // pred_check_branch
    %68 = sbr.rel (0) target = $region81
  $region80: #{wrapped_discriminator_forward.1} parent=0 // pred_region
    _
  $region81: #{wrapped_discriminator_forward.1} parent=0 // pred_fallthru
    _
  %v70 = vld [vmem:[%s3] sm:$0xf]
  %v71 = vld [vmem:[%s3 + $0x4] sm:$0xf]
  %v72 = vld [vmem:[%s3 + $0x8] sm:$0xf]
  %v73 = vld [vmem:[%s3 + $0xc] sm:$0xf]
  %v74 = vld [vmem:[%s3 + $0x10] sm:$0xf]
  %v75 = vld [vmem:[%s3 + $0x14] sm:$0xf]
  %v76 = vld [vmem:[%s3 + $0x18] sm:$0xf]
  %v77 = vld [vmem:[%s3 + $0x1c] sm:$0xf]
  %v78 = vld [vmem:[%s3 + $0x20] sm:$0xf]
  %v79 = vld [vmem:[%s3 + $0x24] sm:$0xf]
  %v80 = vld [vmem:[%s3 + $0x28] sm:$0xf]
  %v81 = vld [vmem:[%s3 + $0x2c] sm:$0xf]
  %v82 = vld [vmem:[%s3 + $0x30] sm:$0xf]
  %v83 = vld [vmem:[%s3 + $0x34] sm:$0xf]
  %v84 = vld [vmem:[%s3 + $0x38] sm:$0xf]
  %v85 = vld [vmem:[%s3 + $0x3c] sm:$0xf]
  %v86 = vld [vmem:[%s3 + $0x40] sm:$0xf]
  %v87 = vld [vmem:[%s3 + $0x44] sm:$0xf]
  %v88 = vld [vmem:[%s3 + $0x48] sm:$0xf]
  %v89 = vld [vmem:[%s3 + $0x4c] sm:$0xf]
  %v90 = vld [vmem:[%s3 + $0x50] sm:$0xf]
  %v91 = vld [vmem:[%s3 + $0x54] sm:$0xf]
  %v92 = vld [vmem:[%s3 + $0x58] sm:$0xf]
  %v93 = vld [vmem:[%s3 + $0x5c] sm:$0xf]
  %v94 = vld [vmem:[%s3 + $0x60] sm:$0xf]
  %v95 = vld [vmem:[%s3 + $0x64] sm:$0xf]
  %v96 = vld [vmem:[%s3 + $0x68] sm:$0xf]
  %v97 = vld [vmem:[%s3 + $0x6c] sm:$0xf]
  %v98 = vld [vmem:[%s3 + $0x70] sm:$0xf]
  %v99 = vld [vmem:[%s3 + $0x74] sm:$0xf]
  %v100 = vld [vmem:[%s3 + $0x78] sm:$0xf]
  %v101 = vld [vmem:[%s3 + $0x7c] sm:$0xf]
  %v102 = vld [vmem:[%s3 + $0x80] sm:$0xf]
  %v103 = vld [vmem:[%s3 + $0x84] sm:$0xf]
  %v104 = vld [vmem:[%s3 + $0x88] sm:$0xf]
  %v105 = vld [vmem:[%s3 + $0x8c] sm:$0xf]
  %v106 = vld [vmem:[%s0] sm:$0xff]
  %v107 = vld [vmem:[%s0 + $0x8] sm:$0xf]
  %v108 = vld [vmem:[%s0 + $0xc] sm:$0xff]
  %v109 = vld [vmem:[%s0 + $0x14] sm:$0xf]
  %v114 = vunpack.c.l.b16 %v106
  %v115 = vunpack.c.h.b16 %v106
  %v116 = vunpack.c.l.b16 %v107
  %v117 = vunpack.c.l.b16 %v108
  %v118 = vunpack.c.h.b16 %v108
  %v119 = vunpack.c.l.b16 %v109
  %v120 = vpack.c.b16 %v117, %v114
  %v121 = vpack.c.b16 %v118, %v115
  %v122 = vpack.c.b16 %v119, %v116
  %v161 = vunpack.c.l.b16 %v70
  %v162 = vunpack.c.l.b16 %v71
  %v163 = vunpack.c.l.b16 %v72
  %v164 = vunpack.c.l.b16 %v73
  %v165 = vunpack.c.l.b16 %v74
  %v166 = vunpack.c.l.b16 %v75
  %v167 = vunpack.c.l.b16 %v76
  %v168 = vunpack.c.l.b16 %v77
  %v169 = vunpack.c.l.b16 %v78
  %v170 = vunpack.c.l.b16 %v79
  %v171 = vunpack.c.l.b16 %v80
  %v172 = vunpack.c.l.b16 %v81
  %v173 = vunpack.c.l.b16 %v82
  %v174 = vunpack.c.l.b16 %v83
  %v175 = vunpack.c.l.b16 %v84
  %v176 = vunpack.c.l.b16 %v85
  %v177 = vunpack.c.l.b16 %v86
  %v178 = vunpack.c.l.b16 %v87
  %v179 = vunpack.c.l.b16 %v88
  %v180 = vunpack.c.l.b16 %v89
  %v181 = vunpack.c.l.b16 %v90
  %v182 = vunpack.c.l.b16 %v91
  %v183 = vunpack.c.l.b16 %v92
  %v184 = vunpack.c.l.b16 %v93
  %v185 = vunpack.c.l.b16 %v94
  %v186 = vunpack.c.l.b16 %v95
  %v187 = vunpack.c.l.b16 %v96
  %v188 = vunpack.c.l.b16 %v97
  %v189 = vunpack.c.l.b16 %v98
  %v190 = vunpack.c.l.b16 %v99
  %v191 = vunpack.c.l.b16 %v100
  %v192 = vunpack.c.l.b16 %v101
  %v193 = vunpack.c.l.b16 %v102
  %v194 = vunpack.c.l.b16 %v103
  %v195 = vunpack.c.l.b16 %v104
  %v196 = vunpack.c.l.b16 %v105
  %v197 = vpack.c.b16 %v162, %v161
  %v198 = vpack.c.b16 %v164, %v163
  %v199 = vpack.c.b16 %v166, %v165
  %v200 = vpack.c.b16 %v168, %v167
  %v201 = vpack.c.b16 %v170, %v169
  %v202 = vpack.c.b16 %v172, %v171
  %v203 = vpack.c.b16 %v174, %v173
  %v204 = vpack.c.b16 %v176, %v175
  %v205 = vpack.c.b16 %v178, %v177
  %v206 = vpack.c.b16 %v180, %v179
  %v207 = vpack.c.b16 %v182, %v181
  %v208 = vpack.c.b16 %v184, %v183
  %v209 = vpack.c.b16 %v186, %v185
  %v210 = vpack.c.b16 %v188, %v187
  %v211 = vpack.c.b16 %v190, %v189
  %v212 = vpack.c.b16 %v192, %v191
  %v213 = vpack.c.b16 %v194, %v193
  %v214 = vpack.c.b16 %v196, %v195
  %vm233 = vcmask 261120
  %v235 = vsel %vm233, %v122, 0
  %237 = vmatprep.subr.bf16.mxu0 0
  %238 = vmatpush1.bf16.msra.mxu0 %v197
  %239 = vmatprep.subr.bf16.mxu0 0
  %240 = vmatpush1.bf16.msra.mxu0 %v198
  %241 = vmatprep.subr.bf16.mxu0 0
  %242 = vmatpush1.bf16.msra.mxu0 %v199
  %243 = vmatprep.subr.bf16.mxu0 0
  %244 = vmatpush1.bf16.msra.mxu0 %v200
  %245 = vmatprep.subr.bf16.mxu0 0
  %246 = vmatpush1.bf16.msra.mxu0 %v201
  %247 = vmatprep.subr.bf16.mxu0 0
  %248 = vmatpush1.bf16.msra.mxu0 %v202
  %249 = vmatprep.subr.bf16.mxu0 0
  %250 = vmatpush1.bf16.msra.mxu0 %v203
  %251 = vmatprep.subr.bf16.mxu0 0
  %252 = vmatpush1.bf16.msra.mxu0 %v204
  %253 = vmatprep.subr.bf16.mxu0 0
  %254 = vmatpush1.bf16.msra.mxu0 %v205
  %255 = vmatprep.subr.bf16.mxu0 0
  %256 = vmatpush1.bf16.msra.mxu0 %v206
  %257 = vmatprep.subr.bf16.mxu0 0
  %258 = vmatpush1.bf16.msra.mxu0 %v207
  %259 = vmatprep.subr.bf16.mxu0 0
  %260 = vmatpush1.bf16.msra.mxu0 %v208
  %261 = vmatprep.subr.bf16.mxu0 0
  %262 = vmatpush1.bf16.msra.mxu0 %v209
  %263 = vmatprep.subr.bf16.mxu0 0
  %264 = vmatpush1.bf16.msra.mxu0 %v210
  %265 = vmatprep.subr.bf16.mxu0 0
  %266 = vmatpush1.bf16.msra.mxu0 %v211
  %267 = vmatprep.subr.bf16.mxu0 0
  %268 = vmatpush1.bf16.msra.mxu0 %v212
  %269 = vmatprep.mubr.bf16.mxu0 %v121
  %270 = vmatmul.mubr.bf16.gmra.mrb[0].mxu0 %v120
  %v271 = vpop.f32.mrb[0].mxu0
  %v272 = vadd.f32 0.0, %v271
  %v273 = vpop.f32.mrb[0].mxu0
  %v274 = vpop.f32.mrb[0].mxu0
  %v275 = vadd.f32 0.0, %v274
  %v276 = vpop.f32.mrb[0].mxu0
  %277 = vdwg.mxu0
  %278 = vmatprep.subr.bf16.mxu0 0
  %279 = vmatpush1.bf16.msra.mxu0 %v213
  %280 = vmatprep.subr.bf16.mxu0 0
  %281 = vmatpush1.bf16.msra.mxu0 %v214
  %282 = vmatprep.subr.bf16.mxu0 0
  %283 = vmatpush1.bf16.msra.mxu0 0
  %284 = vmatprep.subr.bf16.mxu0 0
  %285 = vmatpush1.bf16.msra.mxu0 0
  %286 = vmatprep.subr.bf16.mxu0 0
  %287 = vmatpush1.bf16.msra.mxu0 0
  %288 = vmatprep.subr.bf16.mxu0 0
  %289 = vmatpush1.bf16.msra.mxu0 0
  %290 = vmatprep.subr.bf16.mxu0 0
  %291 = vmatpush1.bf16.msra.mxu0 0
  %292 = vmatprep.subr.bf16.mxu0 0
  %293 = vmatpush1.bf16.msra.mxu0 0
  %294 = vmatprep.subr.bf16.mxu0 0
  %295 = vmatpush1.bf16.msra.mxu0 0
  %296 = vmatprep.subr.bf16.mxu0 0
  %297 = vmatpush1.bf16.msra.mxu0 0
  %298 = vmatprep.subr.bf16.mxu0 0
  %299 = vmatpush1.bf16.msra.mxu0 0
  %300 = vmatprep.subr.bf16.mxu0 0
  %301 = vmatpush1.bf16.msra.mxu0 0
  %302 = vmatprep.subr.bf16.mxu0 0
  %303 = vmatpush1.bf16.msra.mxu0 0
  %304 = vmatprep.subr.bf16.mxu0 0
  %305 = vmatpush1.bf16.msra.mxu0 0
  %306 = vmatprep.subr.bf16.mxu0 0
  %307 = vmatpush1.bf16.msra.mxu0 0
  %308 = vmatprep.subr.bf16.mxu0 0
  %309 = vmatpush1.bf16.msra.mxu0 0
  %310 = vmatprep.mubr.bf16.mxu0 0
  %311 = vmatmul.mubr.bf16.gmra.mrb[0].mxu0 %v235
  %v312 = vpop.f32.mrb[0].mxu0
  %v313 = vadd.f32 %v272, %v312
  %v314 = vpop.f32.mrb[0].mxu0
  %v315 = vpop.f32.mrb[0].mxu0
  %v316 = vadd.f32 %v275, %v315
  %v317 = vpop.f32.mrb[0].mxu0
  %318 = vdwg.mxu0
  %s319 = scalar_lea.vmem %s0, 24
  %v320 = vld [vmem:[%s319] sm:$0xff]
  %v321 = vld [vmem:[%s319 + $0x8] sm:$0xf]
  %v322 = vld [vmem:[%s319 + $0xc] sm:$0xff]
  %v323 = vld [vmem:[%s319 + $0x14] sm:$0xf]
  %v328 = vunpack.c.l.b16 %v320
  %v329 = vunpack.c.h.b16 %v320
  %v330 = vunpack.c.l.b16 %v321
  %v331 = vunpack.c.l.b16 %v322
  %v332 = vunpack.c.h.b16 %v322
  %v333 = vunpack.c.l.b16 %v323
  %v334 = vpack.c.b16 %v331, %v328
  %v335 = vpack.c.b16 %v332, %v329
  %v336 = vpack.c.b16 %v333, %v330
  %v340 = vsel %vm233, %v336, 0
  %342 = vmatprep.subr.bf16.mxu0 0
  %343 = vmatpush1.bf16.msra.mxu0 %v197
  %344 = vmatprep.subr.bf16.mxu0 0
  %345 = vmatpush1.bf16.msra.mxu0 %v198
  %346 = vmatprep.subr.bf16.mxu0 0
  %347 = vmatpush1.bf16.msra.mxu0 %v199
  %348 = vmatprep.subr.bf16.mxu0 0
  %349 = vmatpush1.bf16.msra.mxu0 %v200
  %350 = vmatprep.subr.bf16.mxu0 0
  %351 = vmatpush1.bf16.msra.mxu0 %v201
  %352 = vmatprep.subr.bf16.mxu0 0
  %353 = vmatpush1.bf16.msra.mxu0 %v202
  %354 = vmatprep.subr.bf16.mxu0 0
  %355 = vmatpush1.bf16.msra.mxu0 %v203
  %356 = vmatprep.subr.bf16.mxu0 0
  %357 = vmatpush1.bf16.msra.mxu0 %v204
  %358 = vmatprep.subr.bf16.mxu0 0
  %359 = vmatpush1.bf16.msra.mxu0 %v205
  %360 = vmatprep.subr.bf16.mxu0 0
  %361 = vmatpush1.bf16.msra.mxu0 %v206
  %362 = vmatprep.subr.bf16.mxu0 0
  %363 = vmatpush1.bf16.msra.mxu0 %v207
  %364 = vmatprep.subr.bf16.mxu0 0
  %365 = vmatpush1.bf16.msra.mxu0 %v208
  %366 = vmatprep.subr.bf16.mxu0 0
  %367 = vmatpush1.bf16.msra.mxu0 %v209
  %368 = vmatprep.subr.bf16.mxu0 0
  %369 = vmatpush1.bf16.msra.mxu0 %v210
  %370 = vmatprep.subr.bf16.mxu0 0
  %371 = vmatpush1.bf16.msra.mxu0 %v211
  %372 = vmatprep.subr.bf16.mxu0 0
  %373 = vmatpush1.bf16.msra.mxu0 %v212
  %374 = vmatprep.mubr.bf16.mxu0 %v335
  %375 = vmatmul.mubr.bf16.gmra.mrb[0].mxu0 %v334
  %v376 = vpop.f32.mrb[0].mxu0
  %v377 = vadd.f32 0.0, %v376
  %v378 = vpop.f32.mrb[0].mxu0
  %v379 = vpop.f32.mrb[0].mxu0
  %v380 = vadd.f32 0.0, %v379
  %v381 = vpop.f32.mrb[0].mxu0
  %382 = vdwg.mxu0
  %383 = vmatprep.subr.bf16.mxu0 0
  %384 = vmatpush1.bf16.msra.mxu0 %v213
  %385 = vmatprep.subr.bf16.mxu0 0
  %386 = vmatpush1.bf16.msra.mxu0 %v214
  %387 = vmatprep.subr.bf16.mxu0 0
  %388 = vmatpush1.bf16.msra.mxu0 0
  %389 = vmatprep.subr.bf16.mxu0 0
  %390 = vmatpush1.bf16.msra.mxu0 0
  %391 = vmatprep.subr.bf16.mxu0 0
  %392 = vmatpush1.bf16.msra.mxu0 0
  %393 = vmatprep.subr.bf16.mxu0 0
  %394 = vmatpush1.bf16.msra.mxu0 0
  %395 = vmatprep.subr.bf16.mxu0 0
  %396 = vmatpush1.bf16.msra.mxu0 0
  %397 = vmatprep.subr.bf16.mxu0 0
  %398 = vmatpush1.bf16.msra.mxu0 0
  %399 = vmatprep.subr.bf16.mxu0 0
  %400 = vmatpush1.bf16.msra.mxu0 0
  %401 = vmatprep.subr.bf16.mxu0 0
  %402 = vmatpush1.bf16.msra.mxu0 0
  %403 = vmatprep.subr.bf16.mxu0 0
  %404 = vmatpush1.bf16.msra.mxu0 0
  %405 = vmatprep.subr.bf16.mxu0 0
  %406 = vmatpush1.bf16.msra.mxu0 0
  %407 = vmatprep.subr.bf16.mxu0 0
  %408 = vmatpush1.bf16.msra.mxu0 0
  %409 = vmatprep.subr.bf16.mxu0 0
  %410 = vmatpush1.bf16.msra.mxu0 0
  %411 = vmatprep.subr.bf16.mxu0 0
  %412 = vmatpush1.bf16.msra.mxu0 0
  %413 = vmatprep.subr.bf16.mxu0 0
  %414 = vmatpush1.bf16.msra.mxu0 0
  %415 = vmatprep.mubr.bf16.mxu0 0
  %416 = vmatmul.mubr.bf16.gmra.mrb[0].mxu0 %v340
  %v417 = vpop.f32.mrb[0].mxu0
  %v418 = vadd.f32 %v377, %v417
  %v419 = vpop.f32.mrb[0].mxu0
  %v420 = vpop.f32.mrb[0].mxu0
  %v421 = vadd.f32 %v380, %v420
  %v422 = vpop.f32.mrb[0].mxu0
  %423 = vdwg.mxu0
  %v424 = vmax.f32 %v313, %v418
  %v425 = vmax.f32 %v316, %v421
  %s426 = scalar_lea.vmem %s0, 48
  %v427 = vld [vmem:[%s426] sm:$0xff]
  %v428 = vld [vmem:[%s426 + $0x8] sm:$0xf]
  %v429 = vld [vmem:[%s426 + $0xc] sm:$0xff]
  %v430 = vld [vmem:[%s426 + $0x14] sm:$0xf]
  %v435 = vunpack.c.l.b16 %v427
  %v436 = vunpack.c.h.b16 %v427
  %v437 = vunpack.c.l.b16 %v428
  %v438 = vunpack.c.l.b16 %v429
  %v439 = vunpack.c.h.b16 %v429
  %v440 = vunpack.c.l.b16 %v430
  %v441 = vpack.c.b16 %v438, %v435
  %v442 = vpack.c.b16 %v439, %v436
  %v443 = vpack.c.b16 %v440, %v437
  %v447 = vsel %vm233, %v443, 0
  %449 = vmatprep.subr.bf16.mxu0 0
  %450 = vmatpush1.bf16.msra.mxu0 %v197
  %451 = vmatprep.subr.bf16.mxu0 0
  %452 = vmatpush1.bf16.msra.mxu0 %v198
  %453 = vmatprep.subr.bf16.mxu0 0
  %454 = vmatpush1.bf16.msra.mxu0 %v199
  %455 = vmatprep.subr.bf16.mxu0 0
  %456 = vmatpush1.bf16.msra.mxu0 %v200
  %457 = vmatprep.subr.bf16.mxu0 0
  %458 = vmatpush1.bf16.msra.mxu0 %v201
  %459 = vmatprep.subr.bf16.mxu0 0
  %460 = vmatpush1.bf16.msra.mxu0 %v202
  %461 = vmatprep.subr.bf16.mxu0 0
  %462 = vmatpush1.bf16.msra.mxu0 %v203
  %463 = vmatprep.subr.bf16.mxu0 0
  %464 = vmatpush1.bf16.msra.mxu0 %v204
  %465 = vmatprep.subr.bf16.mxu0 0
  %466 = vmatpush1.bf16.msra.mxu0 %v205
  %467 = vmatprep.subr.bf16.mxu0 0
  %468 = vmatpush1.bf16.msra.mxu0 %v206
  %469 = vmatprep.subr.bf16.mxu0 0
  %470 = vmatpush1.bf16.msra.mxu0 %v207
  %471 = vmatprep.subr.bf16.mxu0 0
  %472 = vmatpush1.bf16.msra.mxu0 %v208
  %473 = vmatprep.subr.bf16.mxu0 0
  %474 = vmatpush1.bf16.msra.mxu0 %v209
  %475 = vmatprep.subr.bf16.mxu0 0
  %476 = vmatpush1.bf16.msra.mxu0 %v210
  %477 = vmatprep.subr.bf16.mxu0 0
  %478 = vmatpush1.bf16.msra.mxu0 %v211
  %479 = vmatprep.subr.bf16.mxu0 0
  %480 = vmatpush1.bf16.msra.mxu0 %v212
  %481 = vmatprep.mubr.bf16.mxu0 %v442
  %482 = vmatmul.mubr.bf16.gmra.mrb[0].mxu0 %v441
  %v483 = vpop.f32.mrb[0].mxu0
  %v484 = vadd.f32 0.0, %v483
  %v485 = vpop.f32.mrb[0].mxu0
  %v486 = vpop.f32.mrb[0].mxu0
  %v487 = vadd.f32 0.0, %v486
  %v488 = vpop.f32.mrb[0].mxu0
  %489 = vdwg.mxu0
  %490 = vmatprep.subr.bf16.mxu0 0
  %491 = vmatpush1.bf16.msra.mxu0 %v213
  %492 = vmatprep.subr.bf16.mxu0 0
  %493 = vmatpush1.bf16.msra.mxu0 %v214
  %494 = vmatprep.subr.bf16.mxu0 0
  %495 = vmatpush1.bf16.msra.mxu0 0
  %496 = vmatprep.subr.bf16.mxu0 0
  %497 = vmatpush1.bf16.msra.mxu0 0
  %498 = vmatprep.subr.bf16.mxu0 0
  %499 = vmatpush1.bf16.msra.mxu0 0
  %500 = vmatprep.subr.bf16.mxu0 0
  %501 = vmatpush1.bf16.msra.mxu0 0
  %502 = vmatprep.subr.bf16.mxu0 0
  %503 = vmatpush1.bf16.msra.mxu0 0
  %504 = vmatprep.subr.bf16.mxu0 0
  %505 = vmatpush1.bf16.msra.mxu0 0
  %506 = vmatprep.subr.bf16.mxu0 0
  %507 = vmatpush1.bf16.msra.mxu0 0
  %508 = vmatprep.subr.bf16.mxu0 0
  %509 = vmatpush1.bf16.msra.mxu0 0
  %510 = vmatprep.subr.bf16.mxu0 0
  %511 = vmatpush1.bf16.msra.mxu0 0
  %512 = vmatprep.subr.bf16.mxu0 0
  %513 = vmatpush1.bf16.msra.mxu0 0
  %514 = vmatprep.subr.bf16.mxu0 0
  %515 = vmatpush1.bf16.msra.mxu0 0
  %516 = vmatprep.subr.bf16.mxu0 0
  %517 = vmatpush1.bf16.msra.mxu0 0
  %518 = vmatprep.subr.bf16.mxu0 0
  %519 = vmatpush1.bf16.msra.mxu0 0
  %520 = vmatprep.subr.bf16.mxu0 0
  %521 = vmatpush1.bf16.msra.mxu0 0
  %522 = vmatprep.mubr.bf16.mxu0 0
  %523 = vmatmul.mubr.bf16.gmra.mrb[0].mxu0 %v447
  %v524 = vpop.f32.mrb[0].mxu0
  %v525 = vadd.f32 %v484, %v524
  %v526 = vpop.f32.mrb[0].mxu0
  %v527 = vpop.f32.mrb[0].mxu0
  %v528 = vadd.f32 %v487, %v527
  %v529 = vpop.f32.mrb[0].mxu0
  %530 = vdwg.mxu0
  %v531 = vmax.f32 %v424, %v525
  %v532 = vmax.f32 %v425, %v528
  %s533 = scalar_lea.vmem %s0, 72
  %v534 = vld [vmem:[%s533] sm:$0xff]
  %v535 = vld [vmem:[%s533 + $0x8] sm:$0xf]
  %v536 = vld [vmem:[%s533 + $0xc] sm:$0xff]
  %v537 = vld [vmem:[%s533 + $0x14] sm:$0xf]
  %v542 = vunpack.c.l.b16 %v534
  %v543 = vunpack.c.h.b16 %v534
  %v544 = vunpack.c.l.b16 %v535
  %v545 = vunpack.c.l.b16 %v536
  %v546 = vunpack.c.h.b16 %v536
  %v547 = vunpack.c.l.b16 %v537
  %v548 = vpack.c.b16 %v545, %v542
  %v549 = vpack.c.b16 %v546, %v543
  %v550 = vpack.c.b16 %v547, %v544
  %v554 = vsel %vm233, %v550, 0
  %556 = vmatprep.subr.bf16.mxu0 0
  %557 = vmatpush1.bf16.msra.mxu0 %v197
  %558 = vmatprep.subr.bf16.mxu0 0
  %559 = vmatpush1.bf16.msra.mxu0 %v198
  %560 = vmatprep.subr.bf16.mxu0 0
  %561 = vmatpush1.bf16.msra.mxu0 %v199
  %562 = vmatprep.subr.bf16.mxu0 0
  %563 = vmatpush1.bf16.msra.mxu0 %v200
  %564 = vmatprep.subr.bf16.mxu0 0
  %565 = vmatpush1.bf16.msra.mxu0 %v201
  %566 = vmatprep.subr.bf16.mxu0 0
  %567 = vmatpush1.bf16.msra.mxu0 %v202
  %568 = vmatprep.subr.bf16.mxu0 0
  %569 = vmatpush1.bf16.msra.mxu0 %v203
  %570 = vmatprep.subr.bf16.mxu0 0
  %571 = vmatpush1.bf16.msra.mxu0 %v204
  %572 = vmatprep.subr.bf16.mxu0 0
  %573 = vmatpush1.bf16.msra.mxu0 %v205
  %574 = vmatprep.subr.bf16.mxu0 0
  %575 = vmatpush1.bf16.msra.mxu0 %v206
  %576 = vmatprep.subr.bf16.mxu0 0
  %577 = vmatpush1.bf16.msra.mxu0 %v207
  %578 = vmatprep.subr.bf16.mxu0 0
  %579 = vmatpush1.bf16.msra.mxu0 %v208
  %580 = vmatprep.subr.bf16.mxu0 0
  %581 = vmatpush1.bf16.msra.mxu0 %v209
  %582 = vmatprep.subr.bf16.mxu0 0
  %583 = vmatpush1.bf16.msra.mxu0 %v210
  %584 = vmatprep.subr.bf16.mxu0 0
  %585 = vmatpush1.bf16.msra.mxu0 %v211
  %586 = vmatprep.subr.bf16.mxu0 0
  %587 = vmatpush1.bf16.msra.mxu0 %v212
  %588 = vmatprep.mubr.bf16.mxu0 %v549
  %589 = vmatmul.mubr.bf16.gmra.mrb[0].mxu0 %v548
  %v590 = vpop.f32.mrb[0].mxu0
  %v591 = vadd.f32 0.0, %v590
  %v592 = vpop.f32.mrb[0].mxu0
  %v593 = vpop.f32.mrb[0].mxu0
  %v594 = vadd.f32 0.0, %v593
  %v595 = vpop.f32.mrb[0].mxu0
  %596 = vdwg.mxu0
  %597 = vmatprep.subr.bf16.mxu0 0
  %598 = vmatpush1.bf16.msra.mxu0 %v213
  %599 = vmatprep.subr.bf16.mxu0 0
  %600 = vmatpush1.bf16.msra.mxu0 %v214
  %601 = vmatprep.subr.bf16.mxu0 0
  %602 = vmatpush1.bf16.msra.mxu0 0
  %603 = vmatprep.subr.bf16.mxu0 0
  %604 = vmatpush1.bf16.msra.mxu0 0
  %605 = vmatprep.subr.bf16.mxu0 0
  %606 = vmatpush1.bf16.msra.mxu0 0
  %607 = vmatprep.subr.bf16.mxu0 0
  %608 = vmatpush1.bf16.msra.mxu0 0
  %609 = vmatprep.subr.bf16.mxu0 0
  %610 = vmatpush1.bf16.msra.mxu0 0
  %611 = vmatprep.subr.bf16.mxu0 0
  %612 = vmatpush1.bf16.msra.mxu0 0
  %613 = vmatprep.subr.bf16.mxu0 0
  %614 = vmatpush1.bf16.msra.mxu0 0
  %615 = vmatprep.subr.bf16.mxu0 0
  %616 = vmatpush1.bf16.msra.mxu0 0
  %617 = vmatprep.subr.bf16.mxu0 0
  %618 = vmatpush1.bf16.msra.mxu0 0
  %619 = vmatprep.subr.bf16.mxu0 0
  %620 = vmatpush1.bf16.msra.mxu0 0
  %621 = vmatprep.subr.bf16.mxu0 0
  %622 = vmatpush1.bf16.msra.mxu0 0
  %623 = vmatprep.subr.bf16.mxu0 0
  %624 = vmatpush1.bf16.msra.mxu0 0
  %625 = vmatprep.subr.bf16.mxu0 0
  %626 = vmatpush1.bf16.msra.mxu0 0
  %627 = vmatprep.subr.bf16.mxu0 0
  %628 = vmatpush1.bf16.msra.mxu0 0
  %629 = vmatprep.mubr.bf16.mxu0 0
  %630 = vmatmul.mubr.bf16.gmra.mrb[0].mxu0 %v554
  %v631 = vpop.f32.mrb[0].mxu0
  %v632 = vadd.f32 %v591, %v631
  %v633 = vpop.f32.mrb[0].mxu0
  %v634 = vpop.f32.mrb[0].mxu0
  %v635 = vadd.f32 %v594, %v634
  %v636 = vpop.f32.mrb[0].mxu0
  %637 = vdwg.mxu0
  %v638 = vmax.f32 %v531, %v632
  %v639 = vmax.f32 %v532, %v635
  %v640 = vld [vmem:[%s4] sm:$0x1]
  %v642 = vlaneseq
  %v643 = vshrl.u32 %v642, 7
  %v644 = vsub.s32 0, %v643
  %v645 = vrot.slane %v640, %v644
  %v647 = vadd.f32 %v638, %v645
  %v648 = vadd.f32 %v639, %v645
  %vm649 = vcmp.ge.f32.partialorder %v647, 0.0
  %vm650 = vcmp.ge.f32.partialorder %v648, 0.0
  %v651 = vmul.f32 %v647, 0.2
  %v652 = vmul.f32 %v648, 0.2
  %v653 = vsel %vm649, %v647, %v651
  %v654 = vsel %vm650, %v648, %v652
  %v655 = vld [vmem:[%s5] sm:$0xff]
  %v656 = vld [vmem:[%s5 + $0x8] sm:$0xff]
  %v657 = vld [vmem:[%s5 + $0x10] sm:$0xff]
  %v658 = vld [vmem:[%s5 + $0x18] sm:$0xff]
  %v659 = vld [vmem:[%s5 + $0x20] sm:$0xff]
  %v660 = vld [vmem:[%s5 + $0x28] sm:$0xff]
  %v661 = vld [vmem:[%s5 + $0x30] sm:$0xff]
  %v662 = vld [vmem:[%s5 + $0x38] sm:$0xff]
  %v663 = vld [vmem:[%s5 + $0x40] sm:$0xff]
  %v664 = vld [vmem:[%s5 + $0x48] sm:$0xff]
  %v665 = vld [vmem:[%s5 + $0x50] sm:$0xff]
  %v666 = vld [vmem:[%s5 + $0x58] sm:$0xff]
  %v667 = vld [vmem:[%s5 + $0x60] sm:$0xff]
  %v668 = vld [vmem:[%s5 + $0x68] sm:$0xff]
  %v669 = vld [vmem:[%s5 + $0x70] sm:$0xff]
  %v670 = vld [vmem:[%s5 + $0x78] sm:$0xff]
  %v671 = vld [vmem:[%s6] sm:$0x1]
  %v673 = vlaneseq
  %v674 = vshrl.u32 %v673, 7
  %v675 = vsub.s32 0, %v674
  %v676 = vrot.slane %v671, %v675
  %678 = vmatprep.subr.mxu0 0.0
  %679 = vmatpush1.msra.mxu0 %v655
  %680 = vmatprep.subr.mxu0 0.0
  %681 = vmatpush1.msra.mxu0 %v656
  %682 = vmatprep.subr.mxu0 0.0
  %683 = vmatpush1.msra.mxu0 %v657
  %684 = vmatprep.subr.mxu0 0.0
  %685 = vmatpush1.msra.mxu0 %v658
  %686 = vmatprep.subr.mxu0 0.0
  %687 = vmatpush1.msra.mxu0 %v659
  %688 = vmatprep.subr.mxu0 0.0
  %689 = vmatpush1.msra.mxu0 %v660
  %690 = vmatprep.subr.mxu0 0.0
  %691 = vmatpush1.msra.mxu0 %v661
  %692 = vmatprep.subr.mxu0 0.0
  %693 = vmatpush1.msra.mxu0 %v662
  %694 = vmatprep.subr.mxu0 0.0
  %695 = vmatpush1.msra.mxu0 %v663
  %696 = vmatprep.subr.mxu0 0.0
  %697 = vmatpush1.msra.mxu0 %v664
  %698 = vmatprep.subr.mxu0 0.0
  %699 = vmatpush1.msra.mxu0 %v665
  %700 = vmatprep.subr.mxu0 0.0
  %701 = vmatpush1.msra.mxu0 %v666
  %702 = vmatprep.subr.mxu0 0.0
  %703 = vmatpush1.msra.mxu0 %v667
  %704 = vmatprep.subr.mxu0 0.0
  %705 = vmatpush1.msra.mxu0 %v668
  %706 = vmatprep.subr.mxu0 0.0
  %707 = vmatpush1.msra.mxu0 %v669
  %708 = vmatprep.subr.mxu0 0.0
  %709 = vmatpush1.msra.mxu0 %v670
  %710 = vmatprep.subr.mxu0 0.0
  %711 = vmatpush1.msra.mxu0 0.0
  %712 = vmatprep.subr.mxu0 0.0
  %713 = vmatpush1.msra.mxu0 0.0
  %714 = vmatprep.subr.mxu0 0.0
  %715 = vmatpush1.msra.mxu0 0.0
  %716 = vmatprep.subr.mxu0 0.0
  %717 = vmatpush1.msra.mxu0 0.0
  %718 = vmatprep.subr.mxu0 0.0
  %719 = vmatpush1.msra.mxu0 0.0
  %720 = vmatprep.subr.mxu0 0.0
  %721 = vmatpush1.msra.mxu0 0.0
  %722 = vmatprep.subr.mxu0 0.0
  %723 = vmatpush1.msra.mxu0 0.0
  %724 = vmatprep.subr.mxu0 0.0
  %725 = vmatpush1.msra.mxu0 0.0
  %726 = vmatprep.subr.mxu0 0.0
  %727 = vmatpush1.msra.mxu0 0.0
  %728 = vmatprep.subr.mxu0 0.0
  %729 = vmatpush1.msra.mxu0 0.0
  %730 = vmatprep.subr.mxu0 0.0
  %731 = vmatpush1.msra.mxu0 0.0
  %732 = vmatprep.subr.mxu0 0.0
  %733 = vmatpush1.msra.mxu0 0.0
  %734 = vmatprep.subr.mxu0 0.0
  %735 = vmatpush1.msra.mxu0 0.0
  %736 = vmatprep.subr.mxu0 0.0
  %737 = vmatpush1.msra.mxu0 0.0
  %738 = vmatprep.subr.mxu0 0.0
  %739 = vmatpush1.msra.mxu0 0.0
  %740 = vmatprep.subr.mxu0 0.0
  %741 = vmatpush1.msra.mxu0 0.0
  %742 = vmatprep.mubr.f32.mxu0 0.0
  %743 = vmatmul.mubr.f32.gmra.mrb[0].mxu0 %v653
  %v744 = vpop.f32.mrb[0].mxu0
  %v745 = vadd.f32 %v676, %v744
  %v746 = vpop.f32.mrb[0].mxu0
  %747 = vmatprep.mubr.f32.mxu0 0.0
  %748 = vmatmul.mubr.f32.gmra.mrb[0].mxu0 %v654
  %v749 = vpop.f32.mrb[0].mxu0
  %v750 = vadd.f32 %v676, %v749
  %v751 = vpop.f32.mrb[0].mxu0
  %752 = vdwg.mxu0
  %vm753 = vcmp.ge.f32.partialorder %v745, 0.0
  %vm754 = vcmp.ge.f32.partialorder %v750, 0.0
  %v755 = vmul.f32 %v745, 0.2
  %v756 = vmul.f32 %v750, 0.2
  %v757 = vsel %vm753, %v745, %v755
  %v758 = vsel %vm754, %v750, %v756
  %v759 = vld [vmem:[%s7] sm:$0xff]
  %v760 = vld [vmem:[%s7 + $0x8] sm:$0xff]
  %v761 = vld [vmem:[%s7 + $0x10] sm:$0xff]
  %v762 = vld [vmem:[%s7 + $0x18] sm:$0x3f]
  %v763 = vld [vmem:[%s1] sm:$0xff]
  %v764 = vld [vmem:[%s1 + $0x8] sm:$0xff]
  %v765 = vld [vmem:[%s8] sm:$0x3f]
  %vm766 = vcmask 48128
  %v768 = vsel %vm766, %v763, 0
  %v771 = vsel %vm766, %v764, 0
  %vm773 = vcmask 1045504
  %v775 = vsel %vm773, %v765, 0
  %777 = vmatprep.subr.mxu0 0.0
  %778 = vmatpush1.msra.mxu0 %v775
  %779 = vmatprep.subr.mxu0 0.0
  %780 = vmatpush1.msra.mxu0 0.0
  %781 = vmatprep.subr.mxu0 0.0
  %782 = vmatpush1.msra.mxu0 0.0
  %783 = vmatprep.subr.mxu0 0.0
  %784 = vmatpush1.msra.mxu0 0.0
  %785 = vmatprep.subr.mxu0 0.0
  %786 = vmatpush1.msra.mxu0 0.0
  %787 = vmatprep.subr.mxu0 0.0
  %788 = vmatpush1.msra.mxu0 0.0
  %789 = vmatprep.subr.mxu0 0.0
  %790 = vmatpush1.msra.mxu0 0.0
  %791 = vmatprep.subr.mxu0 0.0
  %792 = vmatpush1.msra.mxu0 0.0
  %793 = vmatprep.subr.mxu0 0.0
  %794 = vmatpush1.msra.mxu0 0.0
  %795 = vmatprep.subr.mxu0 0.0
  %796 = vmatpush1.msra.mxu0 0.0
  %797 = vmatprep.subr.mxu0 0.0
  %798 = vmatpush1.msra.mxu0 0.0
  %799 = vmatprep.subr.mxu0 0.0
  %800 = vmatpush1.msra.mxu0 0.0
  %801 = vmatprep.subr.mxu0 0.0
  %802 = vmatpush1.msra.mxu0 0.0
  %803 = vmatprep.subr.mxu0 0.0
  %804 = vmatpush1.msra.mxu0 0.0
  %805 = vmatprep.subr.mxu0 0.0
  %806 = vmatpush1.msra.mxu0 0.0
  %807 = vmatprep.subr.mxu0 0.0
  %808 = vmatpush1.msra.mxu0 0.0
  %809 = vmatprep.subr.mxu0 0.0
  %810 = vmatpush1.msra.mxu0 0.0
  %811 = vmatprep.subr.mxu0 0.0
  %812 = vmatpush1.msra.mxu0 0.0
  %813 = vmatprep.subr.mxu0 0.0
  %814 = vmatpush1.msra.mxu0 0.0
  %815 = vmatprep.subr.mxu0 0.0
  %816 = vmatpush1.msra.mxu0 0.0
  %817 = vmatprep.subr.mxu0 0.0
  %818 = vmatpush1.msra.mxu0 0.0
  %819 = vmatprep.subr.mxu0 0.0
  %820 = vmatpush1.msra.mxu0 0.0
  %821 = vmatprep.subr.mxu0 0.0
  %822 = vmatpush1.msra.mxu0 0.0
  %823 = vmatprep.subr.mxu0 0.0
  %824 = vmatpush1.msra.mxu0 0.0
  %825 = vmatprep.subr.mxu0 0.0
  %826 = vmatpush1.msra.mxu0 0.0
  %827 = vmatprep.subr.mxu0 0.0
  %828 = vmatpush1.msra.mxu0 0.0
  %829 = vmatprep.subr.mxu0 0.0
  %830 = vmatpush1.msra.mxu0 0.0
  %831 = vmatprep.subr.mxu0 0.0
  %832 = vmatpush1.msra.mxu0 0.0
  %833 = vmatprep.subr.mxu0 0.0
  %834 = vmatpush1.msra.mxu0 0.0
  %835 = vmatprep.subr.mxu0 0.0
  %836 = vmatpush1.msra.mxu0 0.0
  %837 = vmatprep.subr.mxu0 0.0
  %838 = vmatpush1.msra.mxu0 0.0
  %839 = vmatprep.subr.mxu0 0.0
  %840 = vmatpush1.msra.mxu0 0.0
  %841 = vmatprep.mubr.f32.mxu0 0.0
  %842 = vmatmul.mubr.f32.gmra.mrb[0].mxu0 %v768
  %v843 = vpop.f32.mrb[0].mxu0
  %v844 = vadd.f32 0.0, %v843
  %v845 = vpop.f32.mrb[0].mxu0
  %846 = vmatprep.mubr.f32.mxu0 0.0
  %847 = vmatmul.mubr.f32.gmra.mrb[0].mxu0 %v771
  %v848 = vpop.f32.mrb[0].mxu0
  %v849 = vadd.f32 0.0, %v848
  %v850 = vpop.f32.mrb[0].mxu0
  %851 = vdwg.mxu0
  %vm852 = vcmask 244736
  %v854 = vsel %vm852, %v757, 0
  %v857 = vsel %vm852, %v758, 0
  %v860 = vsel %vm773, %v762, 0
  %862 = vmatprep.subr.mxu0 0.0
  %863 = vmatpush1.msra.mxu0 %v759
  %864 = vmatprep.subr.mxu0 0.0
  %865 = vmatpush1.msra.mxu0 %v760
  %866 = vmatprep.subr.mxu0 0.0
  %867 = vmatpush1.msra.mxu0 %v761
  %868 = vmatprep.subr.mxu0 0.0
  %869 = vmatpush1.msra.mxu0 %v860
  %870 = vmatprep.subr.mxu0 0.0
  %871 = vmatpush1.msra.mxu0 0.0
  %872 = vmatprep.subr.mxu0 0.0
  %873 = vmatpush1.msra.mxu0 0.0
  %874 = vmatprep.subr.mxu0 0.0
  %875 = vmatpush1.msra.mxu0 0.0
  %876 = vmatprep.subr.mxu0 0.0
  %877 = vmatpush1.msra.mxu0 0.0
  %878 = vmatprep.subr.mxu0 0.0
  %879 = vmatpush1.msra.mxu0 0.0
  %880 = vmatprep.subr.mxu0 0.0
  %881 = vmatpush1.msra.mxu0 0.0
  %882 = vmatprep.subr.mxu0 0.0
  %883 = vmatpush1.msra.mxu0 0.0
  %884 = vmatprep.subr.mxu0 0.0
  %885 = vmatpush1.msra.mxu0 0.0
  %886 = vmatprep.subr.mxu0 0.0
  %887 = vmatpush1.msra.mxu0 0.0
  %888 = vmatprep.subr.mxu0 0.0
  %889 = vmatpush1.msra.mxu0 0.0
  %890 = vmatprep.subr.mxu0 0.0
  %891 = vmatpush1.msra.mxu0 0.0
  %892 = vmatprep.subr.mxu0 0.0
  %893 = vmatpush1.msra.mxu0 0.0
  %894 = vmatprep.subr.mxu0 0.0
  %895 = vmatpush1.msra.mxu0 0.0
  %896 = vmatprep.subr.mxu0 0.0
  %897 = vmatpush1.msra.mxu0 0.0
  %898 = vmatprep.subr.mxu0 0.0
  %899 = vmatpush1.msra.mxu0 0.0
  %900 = vmatprep.subr.mxu0 0.0
  %901 = vmatpush1.msra.mxu0 0.0
  %902 = vmatprep.subr.mxu0 0.0
  %903 = vmatpush1.msra.mxu0 0.0
  %904 = vmatprep.subr.mxu0 0.0
  %905 = vmatpush1.msra.mxu0 0.0
  %906 = vmatprep.subr.mxu0 0.0
  %907 = vmatpush1.msra.mxu0 0.0
  %908 = vmatprep.subr.mxu0 0.0
  %909 = vmatpush1.msra.mxu0 0.0
  %910 = vmatprep.subr.mxu0 0.0
  %911 = vmatpush1.msra.mxu0 0.0
  %912 = vmatprep.subr.mxu0 0.0
  %913 = vmatpush1.msra.mxu0 0.0
  %914 = vmatprep.subr.mxu0 0.0
  %915 = vmatpush1.msra.mxu0 0.0
  %916 = vmatprep.subr.mxu0 0.0
  %917 = vmatpush1.msra.mxu0 0.0
  %918 = vmatprep.subr.mxu0 0.0
  %919 = vmatpush1.msra.mxu0 0.0
  %920 = vmatprep.subr.mxu0 0.0
  %921 = vmatpush1.msra.mxu0 0.0
  %922 = vmatprep.subr.mxu0 0.0
  %923 = vmatpush1.msra.mxu0 0.0
  %924 = vmatprep.subr.mxu0 0.0
  %925 = vmatpush1.msra.mxu0 0.0
  %926 = vmatprep.mubr.f32.mxu0 0.0
  %927 = vmatmul.mubr.f32.gmra.mrb[0].mxu0 %v854
  %v928 = vpop.f32.mrb[0].mxu0
  %v929 = vadd.f32 %v844, %v928
  %v930 = vpop.f32.mrb[0].mxu0
  %931 = vmatprep.mubr.f32.mxu0 0.0
  %932 = vmatmul.mubr.f32.gmra.mrb[0].mxu0 %v857
  %v933 = vpop.f32.mrb[0].mxu0
  %v934 = vadd.f32 %v849, %v933
  %v935 = vpop.f32.mrb[0].mxu0
  %936 = vdwg.mxu0
  %v937 = vld [vmem:[%s9] sm:$0x1]
  %v939 = vlaneseq
  %v940 = vshrl.u32 %v939, 7
  %v941 = vsub.s32 0, %v940
  %v942 = vrot.slane %v937, %v941
  %v944 = vadd.f32 %v929, %v942
  %v945 = vadd.f32 %v934, %v942
  %vm946 = vcmp.ge.f32.partialorder %v944, 0.0
  %vm947 = vcmp.ge.f32.partialorder %v945, 0.0
  %v948 = vmul.f32 %v944, 0.2
  %v949 = vmul.f32 %v945, 0.2
  %v950 = vsel %vm946, %v944, %v948
  %v951 = vsel %vm947, %v945, %v949
  %v952 = vld [vmem:[%s10] sm:$0xff]
  %v953 = vld [vmem:[%s10 + $0x8] sm:$0xff]
  %v954 = vld [vmem:[%s10 + $0x10] sm:$0xff]
  %v955 = vld [vmem:[%s10 + $0x18] sm:$0xff]
  %v956 = vld [vmem:[%s10 + $0x20] sm:$0xff]
  %v957 = vld [vmem:[%s10 + $0x28] sm:$0xff]
  %v958 = vld [vmem:[%s10 + $0x30] sm:$0xff]
  %v959 = vld [vmem:[%s10 + $0x38] sm:$0xff]
  %v960 = vld [vmem:[%s11] sm:$0x1]
  %v962 = vlaneseq
  %v963 = vshrl.u32 %v962, 7
  %v964 = vsub.s32 0, %v963
  %v965 = vrot.slane %v960, %v964
  %vm967 = vcmask 523264
  %v969 = vsel %vm967, %v950, 0
  %v972 = vsel %vm967, %v951, 0
  %974 = vmatprep.subr.mxu0 0.0
  %975 = vmatpush1.msra.mxu0 %v952
  %976 = vmatprep.subr.mxu0 0.0
  %977 = vmatpush1.msra.mxu0 %v953
  %978 = vmatprep.subr.mxu0 0.0
  %979 = vmatpush1.msra.mxu0 %v954
  %980 = vmatprep.subr.mxu0 0.0
  %981 = vmatpush1.msra.mxu0 %v955
  %982 = vmatprep.subr.mxu0 0.0
  %983 = vmatpush1.msra.mxu0 %v956
  %984 = vmatprep.subr.mxu0 0.0
  %985 = vmatpush1.msra.mxu0 %v957
  %986 = vmatprep.subr.mxu0 0.0
  %987 = vmatpush1.msra.mxu0 %v958
  %988 = vmatprep.subr.mxu0 0.0
  %989 = vmatpush1.msra.mxu0 %v959
  %990 = vmatprep.subr.mxu0 0.0
  %991 = vmatpush1.msra.mxu0 0.0
  %992 = vmatprep.subr.mxu0 0.0
  %993 = vmatpush1.msra.mxu0 0.0
  %994 = vmatprep.subr.mxu0 0.0
  %995 = vmatpush1.msra.mxu0 0.0
  %996 = vmatprep.subr.mxu0 0.0
  %997 = vmatpush1.msra.mxu0 0.0
  %998 = vmatprep.subr.mxu0 0.0
  %999 = vmatpush1.msra.mxu0 0.0
  %1000 = vmatprep.subr.mxu0 0.0
  %1001 = vmatpush1.msra.mxu0 0.0
  %1002 = vmatprep.subr.mxu0 0.0
  %1003 = vmatpush1.msra.mxu0 0.0
  %1004 = vmatprep.subr.mxu0 0.0
  %1005 = vmatpush1.msra.mxu0 0.0
  %1006 = vmatprep.subr.mxu0 0.0
  %1007 = vmatpush1.msra.mxu0 0.0
  %1008 = vmatprep.subr.mxu0 0.0
  %1009 = vmatpush1.msra.mxu0 0.0
  %1010 = vmatprep.subr.mxu0 0.0
  %1011 = vmatpush1.msra.mxu0 0.0
  %1012 = vmatprep.subr.mxu0 0.0
  %1013 = vmatpush1.msra.mxu0 0.0
  %1014 = vmatprep.subr.mxu0 0.0
  %1015 = vmatpush1.msra.mxu0 0.0
  %1016 = vmatprep.subr.mxu0 0.0
  %1017 = vmatpush1.msra.mxu0 0.0
  %1018 = vmatprep.subr.mxu0 0.0
  %1019 = vmatpush1.msra.mxu0 0.0
  %1020 = vmatprep.subr.mxu0 0.0
  %1021 = vmatpush1.msra.mxu0 0.0
  %1022 = vmatprep.subr.mxu0 0.0
  %1023 = vmatpush1.msra.mxu0 0.0
  %1024 = vmatprep.subr.mxu0 0.0
  %1025 = vmatpush1.msra.mxu0 0.0
  %1026 = vmatprep.subr.mxu0 0.0
  %1027 = vmatpush1.msra.mxu0 0.0
  %1028 = vmatprep.subr.mxu0 0.0
  %1029 = vmatpush1.msra.mxu0 0.0
  %1030 = vmatprep.subr.mxu0 0.0
  %1031 = vmatpush1.msra.mxu0 0.0
  %1032 = vmatprep.subr.mxu0 0.0
  %1033 = vmatpush1.msra.mxu0 0.0
  %1034 = vmatprep.subr.mxu0 0.0
  %1035 = vmatpush1.msra.mxu0 0.0
  %1036 = vmatprep.subr.mxu0 0.0
  %1037 = vmatpush1.msra.mxu0 0.0
  %1038 = vmatprep.mubr.f32.mxu0 0.0
  %1039 = vmatmul.mubr.f32.gmra.mrb[0].mxu0 %v969
  %v1040 = vpop.f32.mrb[0].mxu0
  %v1041 = vadd.f32 %v965, %v1040
  %v1042 = vpop.f32.mrb[0].mxu0
  %1043 = vmatprep.mubr.f32.mxu0 0.0
  %1044 = vmatmul.mubr.f32.gmra.mrb[0].mxu0 %v972
  %v1045 = vpop.f32.mrb[0].mxu0
  %v1046 = vadd.f32 %v965, %v1045
  %v1047 = vpop.f32.mrb[0].mxu0
  %1048 = vdwg.mxu0
  %vm1049 = vcmp.ge.f32.partialorder %v1041, 0.0
  %vm1050 = vcmp.ge.f32.partialorder %v1046, 0.0
  %v1051 = vmul.f32 %v1041, 0.2
  %v1052 = vmul.f32 %v1046, 0.2
  %v1053 = vsel %vm1049, %v1041, %v1051
  %v1054 = vsel %vm1050, %v1046, %v1052
  %v1055 = vld [vmem:[%s12] sm:$0xff]
  %v1056 = vld [vmem:[%s12 + $0x8] sm:$0xff]
  %v1057 = vld [vmem:[%s12 + $0x10] sm:$0xff]
  %v1058 = vld [vmem:[%s12 + $0x18] sm:$0xff]
  %v1059 = vld [vmem:[#allocation2] sm:$0x1]
  %v1061 = vlaneseq
  %v1062 = vshrl.u32 %v1061, 7
  %v1063 = vsub.s32 0, %v1062
  %v1064 = vrot.slane %v1059, %v1063
  %v1067 = vsel %vm233, %v1053, 0
  %v1070 = vsel %vm233, %v1054, 0
  %1072 = vmatprep.subr.mxu0 0.0
  %1073 = vmatpush1.msra.mxu0 %v1055
  %1074 = vmatprep.subr.mxu0 0.0
  %1075 = vmatpush1.msra.mxu0 %v1056
  %1076 = vmatprep.subr.mxu0 0.0
  %1077 = vmatpush1.msra.mxu0 %v1057
  %1078 = vmatprep.subr.mxu0 0.0
  %1079 = vmatpush1.msra.mxu0 %v1058
  %1080 = vmatprep.subr.mxu0 0.0
  %1081 = vmatpush1.msra.mxu0 0.0
  %1082 = vmatprep.subr.mxu0 0.0
  %1083 = vmatpush1.msra.mxu0 0.0
  %1084 = vmatprep.subr.mxu0 0.0
  %1085 = vmatpush1.msra.mxu0 0.0
  %1086 = vmatprep.subr.mxu0 0.0
  %1087 = vmatpush1.msra.mxu0 0.0
  %1088 = vmatprep.subr.mxu0 0.0
  %1089 = vmatpush1.msra.mxu0 0.0
  %1090 = vmatprep.subr.mxu0 0.0
  %1091 = vmatpush1.msra.mxu0 0.0
  %1092 = vmatprep.subr.mxu0 0.0
  %1093 = vmatpush1.msra.mxu0 0.0
  %1094 = vmatprep.subr.mxu0 0.0
  %1095 = vmatpush1.msra.mxu0 0.0
  %1096 = vmatprep.subr.mxu0 0.0
  %1097 = vmatpush1.msra.mxu0 0.0
  %1098 = vmatprep.subr.mxu0 0.0
  %1099 = vmatpush1.msra.mxu0 0.0
  %1100 = vmatprep.subr.mxu0 0.0
  %1101 = vmatpush1.msra.mxu0 0.0
  %1102 = vmatprep.subr.mxu0 0.0
  %1103 = vmatpush1.msra.mxu0 0.0
  %1104 = vmatprep.subr.mxu0 0.0
  %1105 = vmatpush1.msra.mxu0 0.0
  %1106 = vmatprep.subr.mxu0 0.0
  %1107 = vmatpush1.msra.mxu0 0.0
  %1108 = vmatprep.subr.mxu0 0.0
  %1109 = vmatpush1.msra.mxu0 0.0
  %1110 = vmatprep.subr.mxu0 0.0
  %1111 = vmatpush1.msra.mxu0 0.0
  %1112 = vmatprep.subr.mxu0 0.0
  %1113 = vmatpush1.msra.mxu0 0.0
  %1114 = vmatprep.subr.mxu0 0.0
  %1115 = vmatpush1.msra.mxu0 0.0
  %1116 = vmatprep.subr.mxu0 0.0
  %1117 = vmatpush1.msra.mxu0 0.0
  %1118 = vmatprep.subr.mxu0 0.0
  %1119 = vmatpush1.msra.mxu0 0.0
  %1120 = vmatprep.subr.mxu0 0.0
  %1121 = vmatpush1.msra.mxu0 0.0
  %1122 = vmatprep.subr.mxu0 0.0
  %1123 = vmatpush1.msra.mxu0 0.0
  %1124 = vmatprep.subr.mxu0 0.0
  %1125 = vmatpush1.msra.mxu0 0.0
  %1126 = vmatprep.subr.mxu0 0.0
  %1127 = vmatpush1.msra.mxu0 0.0
  %1128 = vmatprep.subr.mxu0 0.0
  %1129 = vmatpush1.msra.mxu0 0.0
  %1130 = vmatprep.subr.mxu0 0.0
  %1131 = vmatpush1.msra.mxu0 0.0
  %1132 = vmatprep.subr.mxu0 0.0
  %1133 = vmatpush1.msra.mxu0 0.0
  %1134 = vmatprep.subr.mxu0 0.0
  %1135 = vmatpush1.msra.mxu0 0.0
  %1136 = vmatprep.mubr.f32.mxu0 0.0
  %1137 = vmatmul.mubr.f32.gmra.mrb[0].mxu0 %v1067
  %v1138 = vpop.f32.mrb[0].mxu0
  %v1139 = vadd.f32 %v1064, %v1138
  %v1140 = vpop.f32.mrb[0].mxu0
  %1141 = vmatprep.mubr.f32.mxu0 0.0
  %1142 = vmatmul.mubr.f32.gmra.mrb[0].mxu0 %v1070
  %v1143 = vpop.f32.mrb[0].mxu0
  %v1144 = vadd.f32 %v1064, %v1143
  %v1145 = vpop.f32.mrb[0].mxu0
  %1146 = vdwg.mxu0
  %v1147 = vld [vmem:[%s2] sm:$0xff]
  %v1148 = vld [vmem:[%s2 + $0x8] sm:$0xff]
  %v1149 = vld [vmem:[%s14] sm:$0xff]
  %v1150 = vld [vmem:[%s14 + $0x8] sm:$0xff]
  %v1151 = vld [vmem:[%s14 + $0x10] sm:$0xff]
  %v1152 = vld [vmem:[%s14 + $0x18] sm:$0xff]
  %v1153 = vld [vmem:[%s15] sm:$0x1]
  %v1155 = vlaneseq
  %v1156 = vshrl.u32 %v1155, 7
  %v1157 = vsub.s32 0, %v1156
  %v1158 = vrot.slane %v1153, %v1157
  %v1161 = vsel %vm233, %v1147, 0
  %v1164 = vsel %vm233, %v1148, 0
  %1166 = vmatprep.subr.mxu0 0.0
  %1167 = vmatpush1.msra.mxu0 %v1149
  %1168 = vmatprep.subr.mxu0 0.0
  %1169 = vmatpush1.msra.mxu0 %v1150
  %1170 = vmatprep.subr.mxu0 0.0
  %1171 = vmatpush1.msra.mxu0 %v1151
  %1172 = vmatprep.subr.mxu0 0.0
  %1173 = vmatpush1.msra.mxu0 %v1152
  %1174 = vmatprep.subr.mxu0 0.0
  %1175 = vmatpush1.msra.mxu0 0.0
  %1176 = vmatprep.subr.mxu0 0.0
  %1177 = vmatpush1.msra.mxu0 0.0
  %1178 = vmatprep.subr.mxu0 0.0
  %1179 = vmatpush1.msra.mxu0 0.0
  %1180 = vmatprep.subr.mxu0 0.0
  %1181 = vmatpush1.msra.mxu0 0.0
  %1182 = vmatprep.subr.mxu0 0.0
  %1183 = vmatpush1.msra.mxu0 0.0
  %1184 = vmatprep.subr.mxu0 0.0
  %1185 = vmatpush1.msra.mxu0 0.0
  %1186 = vmatprep.subr.mxu0 0.0
  %1187 = vmatpush1.msra.mxu0 0.0
  %1188 = vmatprep.subr.mxu0 0.0
  %1189 = vmatpush1.msra.mxu0 0.0
  %1190 = vmatprep.subr.mxu0 0.0
  %1191 = vmatpush1.msra.mxu0 0.0
  %1192 = vmatprep.subr.mxu0 0.0
  %1193 = vmatpush1.msra.mxu0 0.0
  %1194 = vmatprep.subr.mxu0 0.0
  %1195 = vmatpush1.msra.mxu0 0.0
  %1196 = vmatprep.subr.mxu0 0.0
  %1197 = vmatpush1.msra.mxu0 0.0
  %1198 = vmatprep.subr.mxu0 0.0
  %1199 = vmatpush1.msra.mxu0 0.0
  %1200 = vmatprep.subr.mxu0 0.0
  %1201 = vmatpush1.msra.mxu0 0.0
  %1202 = vmatprep.subr.mxu0 0.0
  %1203 = vmatpush1.msra.mxu0 0.0
  %1204 = vmatprep.subr.mxu0 0.0
  %1205 = vmatpush1.msra.mxu0 0.0
  %1206 = vmatprep.subr.mxu0 0.0
  %1207 = vmatpush1.msra.mxu0 0.0
  %1208 = vmatprep.subr.mxu0 0.0
  %1209 = vmatpush1.msra.mxu0 0.0
  %1210 = vmatprep.subr.mxu0 0.0
  %1211 = vmatpush1.msra.mxu0 0.0
  %1212 = vmatprep.subr.mxu0 0.0
  %1213 = vmatpush1.msra.mxu0 0.0
  %1214 = vmatprep.subr.mxu0 0.0
  %1215 = vmatpush1.msra.mxu0 0.0
  %1216 = vmatprep.subr.mxu0 0.0
  %1217 = vmatpush1.msra.mxu0 0.0
  %1218 = vmatprep.subr.mxu0 0.0
  %1219 = vmatpush1.msra.mxu0 0.0
  %1220 = vmatprep.subr.mxu0 0.0
  %1221 = vmatpush1.msra.mxu0 0.0
  %1222 = vmatprep.subr.mxu0 0.0
  %1223 = vmatpush1.msra.mxu0 0.0
  %1224 = vmatprep.subr.mxu0 0.0
  %1225 = vmatpush1.msra.mxu0 0.0
  %1226 = vmatprep.subr.mxu0 0.0
  %1227 = vmatpush1.msra.mxu0 0.0
  %1228 = vmatprep.subr.mxu0 0.0
  %1229 = vmatpush1.msra.mxu0 0.0
  %1230 = vmatprep.mubr.f32.mxu0 0.0
  %1231 = vmatmul.mubr.f32.gmra.mrb[0].mxu0 %v1161
  %v1232 = vpop.f32.mrb[0].mxu0
  %v1233 = vadd.f32 %v1158, %v1232
  %v1234 = vpop.f32.mrb[0].mxu0
  %1235 = vmatprep.mubr.f32.mxu0 0.0
  %1236 = vmatmul.mubr.f32.gmra.mrb[0].mxu0 %v1164
  %v1237 = vpop.f32.mrb[0].mxu0
  %v1238 = vadd.f32 %v1158, %v1237
  %v1239 = vpop.f32.mrb[0].mxu0
  %1240 = vdwg.mxu0
  %vm1241 = vcmp.ge.f32.partialorder %v1233, 0.0
  %vm1242 = vcmp.ge.f32.partialorder %v1238, 0.0
  %v1243 = vmul.f32 %v1233, 0.2
  %v1244 = vmul.f32 %v1238, 0.2
  %v1245 = vsel %vm1241, %v1233, %v1243
  %v1246 = vsel %vm1242, %v1238, %v1244
  %v1247 = vld [vmem:[%s16] sm:$0xff]
  %v1248 = vld [vmem:[%s16 + $0x8] sm:$0xff]
  %v1249 = vld [vmem:[%s16 + $0x10] sm:$0xff]
  %v1250 = vld [vmem:[%s16 + $0x18] sm:$0xff]
  %v1251 = vld [vmem:[%s16 + $0x20] sm:$0xff]
  %v1252 = vld [vmem:[%s16 + $0x28] sm:$0xff]
  %v1253 = vld [vmem:[%s16 + $0x30] sm:$0xff]
  %v1254 = vld [vmem:[%s16 + $0x38] sm:$0xff]
  %v1255 = vld [vmem:[%s17] sm:$0x1]
  %v1257 = vlaneseq
  %v1258 = vshrl.u32 %v1257, 7
  %v1259 = vsub.s32 0, %v1258
  %v1260 = vrot.slane %v1255, %v1259
  %v1263 = vsel %vm967, %v1245, 0
  %v1266 = vsel %vm967, %v1246, 0
  %1268 = vmatprep.subr.mxu0 0.0
  %1269 = vmatpush1.msra.mxu0 %v1247
  %1270 = vmatprep.subr.mxu0 0.0
  %1271 = vmatpush1.msra.mxu0 %v1248
  %1272 = vmatprep.subr.mxu0 0.0
  %1273 = vmatpush1.msra.mxu0 %v1249
  %1274 = vmatprep.subr.mxu0 0.0
  %1275 = vmatpush1.msra.mxu0 %v1250
  %1276 = vmatprep.subr.mxu0 0.0
  %1277 = vmatpush1.msra.mxu0 %v1251
  %1278 = vmatprep.subr.mxu0 0.0
  %1279 = vmatpush1.msra.mxu0 %v1252
  %1280 = vmatprep.subr.mxu0 0.0
  %1281 = vmatpush1.msra.mxu0 %v1253
  %1282 = vmatprep.subr.mxu0 0.0
  %1283 = vmatpush1.msra.mxu0 %v1254
  %1284 = vmatprep.subr.mxu0 0.0
  %1285 = vmatpush1.msra.mxu0 0.0
  %1286 = vmatprep.subr.mxu0 0.0
  %1287 = vmatpush1.msra.mxu0 0.0
  %1288 = vmatprep.subr.mxu0 0.0
  %1289 = vmatpush1.msra.mxu0 0.0
  %1290 = vmatprep.subr.mxu0 0.0
  %1291 = vmatpush1.msra.mxu0 0.0
  %1292 = vmatprep.subr.mxu0 0.0
  %1293 = vmatpush1.msra.mxu0 0.0
  %1294 = vmatprep.subr.mxu0 0.0
  %1295 = vmatpush1.msra.mxu0 0.0
  %1296 = vmatprep.subr.mxu0 0.0
  %1297 = vmatpush1.msra.mxu0 0.0
  %1298 = vmatprep.subr.mxu0 0.0
  %1299 = vmatpush1.msra.mxu0 0.0
  %1300 = vmatprep.subr.mxu0 0.0
  %1301 = vmatpush1.msra.mxu0 0.0
  %1302 = vmatprep.subr.mxu0 0.0
  %1303 = vmatpush1.msra.mxu0 0.0
  %1304 = vmatprep.subr.mxu0 0.0
  %1305 = vmatpush1.msra.mxu0 0.0
  %1306 = vmatprep.subr.mxu0 0.0
  %1307 = vmatpush1.msra.mxu0 0.0
  %1308 = vmatprep.subr.mxu0 0.0
  %1309 = vmatpush1.msra.mxu0 0.0
  %1310 = vmatprep.subr.mxu0 0.0
  %1311 = vmatpush1.msra.mxu0 0.0
  %1312 = vmatprep.subr.mxu0 0.0
  %1313 = vmatpush1.msra.mxu0 0.0
  %1314 = vmatprep.subr.mxu0 0.0
  %1315 = vmatpush1.msra.mxu0 0.0
  %1316 = vmatprep.subr.mxu0 0.0
  %1317 = vmatpush1.msra.mxu0 0.0
  %1318 = vmatprep.subr.mxu0 0.0
  %1319 = vmatpush1.msra.mxu0 0.0
  %1320 = vmatprep.subr.mxu0 0.0
  %1321 = vmatpush1.msra.mxu0 0.0
  %1322 = vmatprep.subr.mxu0 0.0
  %1323 = vmatpush1.msra.mxu0 0.0
  %1324 = vmatprep.subr.mxu0 0.0
  %1325 = vmatpush1.msra.mxu0 0.0
  %1326 = vmatprep.subr.mxu0 0.0
  %1327 = vmatpush1.msra.mxu0 0.0
  %1328 = vmatprep.subr.mxu0 0.0
  %1329 = vmatpush1.msra.mxu0 0.0
  %1330 = vmatprep.subr.mxu0 0.0
  %1331 = vmatpush1.msra.mxu0 0.0
  %1332 = vmatprep.mubr.f32.mxu0 0.0
  %1333 = vmatmul.mubr.f32.gmra.mrb[0].mxu0 %v1263
  %v1334 = vpop.f32.mrb[0].mxu0
  %v1335 = vadd.f32 %v1260, %v1334
  %v1336 = vpop.f32.mrb[0].mxu0
  %1337 = vmatprep.mubr.f32.mxu0 0.0
  %1338 = vmatmul.mubr.f32.gmra.mrb[0].mxu0 %v1266
  %v1339 = vpop.f32.mrb[0].mxu0
  %v1340 = vadd.f32 %v1260, %v1339
  %v1341 = vpop.f32.mrb[0].mxu0
  %1342 = vdwg.mxu0
  %vm1343 = vcmp.ge.f32.partialorder %v1335, 0.0
  %vm1344 = vcmp.ge.f32.partialorder %v1340, 0.0
  %v1345 = vmul.f32 %v1335, 0.2
  %v1346 = vmul.f32 %v1340, 0.2
  %v1347 = vsel %vm1343, %v1335, %v1345
  %v1348 = vsel %vm1344, %v1340, %v1346
  %v1349 = vld [vmem:[%s18] sm:$0xff]
  %v1350 = vld [vmem:[%s18 + $0x8] sm:$0xff]
  %v1351 = vld [vmem:[%s18 + $0x10] sm:$0xff]
  %v1352 = vld [vmem:[%s18 + $0x18] sm:$0xff]
  %v1353 = vld [vmem:[%s18 + $0x20] sm:$0xff]
  %v1354 = vld [vmem:[%s18 + $0x28] sm:$0xff]
  %v1355 = vld [vmem:[%s18 + $0x30] sm:$0xff]
  %v1356 = vld [vmem:[%s18 + $0x38] sm:$0xff]
  %v1357 = vld [vmem:[#allocation3] sm:$0x1]
  %v1359 = vlaneseq
  %v1360 = vshrl.u32 %v1359, 7
  %v1361 = vsub.s32 0, %v1360
  %v1362 = vrot.slane %v1357, %v1361
  %v1365 = vsel %vm967, %v1347, 0
  %v1368 = vsel %vm967, %v1348, 0
  %1370 = vmatprep.subr.mxu0 0.0
  %1371 = vmatpush1.msra.mxu0 %v1349
  %1372 = vmatprep.subr.mxu0 0.0
  %1373 = vmatpush1.msra.mxu0 %v1350
  %1374 = vmatprep.subr.mxu0 0.0
  %1375 = vmatpush1.msra.mxu0 %v1351
  %1376 = vmatprep.subr.mxu0 0.0
  %1377 = vmatpush1.msra.mxu0 %v1352
  %1378 = vmatprep.subr.mxu0 0.0
  %1379 = vmatpush1.msra.mxu0 %v1353
  %1380 = vmatprep.subr.mxu0 0.0
  %1381 = vmatpush1.msra.mxu0 %v1354
  %1382 = vmatprep.subr.mxu0 0.0
  %1383 = vmatpush1.msra.mxu0 %v1355
  %1384 = vmatprep.subr.mxu0 0.0
  %1385 = vmatpush1.msra.mxu0 %v1356
  %1386 = vmatprep.subr.mxu0 0.0
  %1387 = vmatpush1.msra.mxu0 0.0
  %1388 = vmatprep.subr.mxu0 0.0
  %1389 = vmatpush1.msra.mxu0 0.0
  %1390 = vmatprep.subr.mxu0 0.0
  %1391 = vmatpush1.msra.mxu0 0.0
  %1392 = vmatprep.subr.mxu0 0.0
  %1393 = vmatpush1.msra.mxu0 0.0
  %1394 = vmatprep.subr.mxu0 0.0
  %1395 = vmatpush1.msra.mxu0 0.0
  %1396 = vmatprep.subr.mxu0 0.0
  %1397 = vmatpush1.msra.mxu0 0.0
  %1398 = vmatprep.subr.mxu0 0.0
  %1399 = vmatpush1.msra.mxu0 0.0
  %1400 = vmatprep.subr.mxu0 0.0
  %1401 = vmatpush1.msra.mxu0 0.0
  %1402 = vmatprep.subr.mxu0 0.0
  %1403 = vmatpush1.msra.mxu0 0.0
  %1404 = vmatprep.subr.mxu0 0.0
  %1405 = vmatpush1.msra.mxu0 0.0
  %1406 = vmatprep.subr.mxu0 0.0
  %1407 = vmatpush1.msra.mxu0 0.0
  %1408 = vmatprep.subr.mxu0 0.0
  %1409 = vmatpush1.msra.mxu0 0.0
  %1410 = vmatprep.subr.mxu0 0.0
  %1411 = vmatpush1.msra.mxu0 0.0
  %1412 = vmatprep.subr.mxu0 0.0
  %1413 = vmatpush1.msra.mxu0 0.0
  %1414 = vmatprep.subr.mxu0 0.0
  %1415 = vmatpush1.msra.mxu0 0.0
  %1416 = vmatprep.subr.mxu0 0.0
  %1417 = vmatpush1.msra.mxu0 0.0
  %1418 = vmatprep.subr.mxu0 0.0
  %1419 = vmatpush1.msra.mxu0 0.0
  %1420 = vmatprep.subr.mxu0 0.0
  %1421 = vmatpush1.msra.mxu0 0.0
  %1422 = vmatprep.subr.mxu0 0.0
  %1423 = vmatpush1.msra.mxu0 0.0
  %1424 = vmatprep.subr.mxu0 0.0
  %1425 = vmatpush1.msra.mxu0 0.0
  %1426 = vmatprep.subr.mxu0 0.0
  %1427 = vmatpush1.msra.mxu0 0.0
  %1428 = vmatprep.subr.mxu0 0.0
  %1429 = vmatpush1.msra.mxu0 0.0
  %1430 = vmatprep.subr.mxu0 0.0
  %1431 = vmatpush1.msra.mxu0 0.0
  %1432 = vmatprep.subr.mxu0 0.0
  %1433 = vmatpush1.msra.mxu0 0.0
  %1434 = vmatprep.mubr.f32.mxu0 0.0
  %1435 = vmatmul.mubr.f32.gmra.mrb[0].mxu0 %v1365
  %v1436 = vpop.f32.mrb[0].mxu0
  %v1437 = vadd.f32 %v1362, %v1436
  %v1438 = vpop.f32.mrb[0].mxu0
  %1439 = vmatprep.mubr.f32.mxu0 0.0
  %1440 = vmatmul.mubr.f32.gmra.mrb[0].mxu0 %v1368
  %v1441 = vpop.f32.mrb[0].mxu0
  %v1442 = vadd.f32 %v1362, %v1441
  %v1443 = vpop.f32.mrb[0].mxu0
  %1444 = vdwg.mxu0
  %v1445 = vadd.f32 %v1139, %v1437
  %v1446 = vadd.f32 %v1144, %v1442
  %vm1447 = vcmask 7168
  %1448 = vst.msk [vmem:[%s20] sm:$0xff] %vm1447, %v1445
  %1449 = vst.msk [vmem:[%s20 + $0x8] sm:$0xff] %vm1447, %v1446
  // Predicated region
  $region82: #{wrapped_discriminator_forward.1} parent=0 // pred_check
    _
  $region83: #{wrapped_discriminator_forward.1} parent=0 // pred_check_branch
    %1451 = sbr.rel (0) target = $region85
  $region84: #{wrapped_discriminator_forward.1} parent=0 // pred_region
    _
  $region85: #{wrapped_discriminator_forward.1} parent=0 // pred_fallthru
    _
  // Predicated region
  $region86: #{wrapped_discriminator_forward.1} parent=0 // pred_check
    _
  $region87: #{wrapped_discriminator_forward.1} parent=0 // pred_check_branch
    %1453 = sbr.rel (0) target = $region89
  $region88: #{wrapped_discriminator_forward.1} parent=0 // pred_region
    _
  $region89: #{wrapped_discriminator_forward.1} parent=0 // pred_fallthru
    _

</llo_original>
